<compile_context>
chip_gen: v7x
topology: tpu7x:2x2x1
jax: 0.10.0
libtpu: 0.0.40
codegen_flags: <defaults>
</compile_context>

<pallas_src>
import numpy as np
import jax
import jax.numpy as jnp
from jax.experimental import pallas as pl
from jax.experimental.pallas import tpu as pltpu

NUM_CLASSES = 8          # len(EMOTION_CLASSES)
LANE = 128               # TPU lane width; logits written lane-dense, sliced outside


def _round_up(x, m):
    return (x + m - 1) // m * m


# --------------------- constant pooling / averaging matrices -----------------

def _pool_embed_matrix(H, W, pitch_in, pitch_out):
    """0/1 matrix mapping the flat 2x2-max-pooled values of an HxW conv output
    (pooled (ph,pw) lives at flat row 2*ph*pitch_in + 2*pw) onto the next
    layer's zero-padded flat slab (row (ph+1)*pitch_out + (pw+1)).  Slab rows
    not hit by the selection (zero ring + pitch padding) stay exactly zero."""
    Ho, Wo = H // 2, W // 2
    n_in = (H - 2) * pitch_in + (W - 2) + 1
    n_out = (Ho + 2) * pitch_out
    S = np.zeros((n_out, n_in), np.float32)
    for ph in range(Ho):
        for pw in range(Wo):
            S[(ph + 1) * pitch_out + (pw + 1), 2 * ph * pitch_in + 2 * pw] = 1.0
    return S


def _avg_matrix(H, W, pitch_in, stride, b_tile, n_cols):
    """(b_tile, n_cols) matrix averaging each image's pooled values
    (== MaxPool2d(2) followed by AdaptiveAvgPool2d((1,1)))."""
    Ho, Wo = H // 2, W // 2
    A = np.zeros((b_tile, n_cols), np.float32)
    for b in range(b_tile):
        for ph in range(Ho):
            for pw in range(Wo):
                A[b, b * stride + 2 * ph * pitch_in + 2 * pw] = 1.0 / (Ho * Wo)
    return A


# --------------------------- fused Pallas kernel -----------------------------

def _make_fused_kernel(b_tile, H, W):
    H2, W2 = H // 2, W // 2
    H3, W3 = H // 4, W // 4
    P1 = W                                  # conv1 output row pitch (compact)
    Wp2 = _round_up(W2 + 2, 8)              # conv2 zero-padded slab pitch
    Wp3 = _round_up(W3 + 2, 8)              # conv3 zero-padded slab pitch
    M1 = H * W                              # per-image conv1 rows
    R2 = (H2 + 2) * Wp2                     # per-image conv2 slab rows
    R3 = (H3 + 2) * Wp3                     # per-image conv3 slab rows
    LS1 = (H - 2) * P1 + (W - 2) + 1        # pooled rows consumed by s1
    LS2 = (H2 - 2) * Wp2 + (W2 - 2) + 1     # pooled rows consumed by s2

    def maxpool(y, pitch):
        # Flat conv+relu output, row k = h*pitch + w.  The 2x2/stride-2 pooled
        # value of (ph, pw) ends up at row 2*ph*pitch + 2*pw.
        n = y.shape[0]
        hp = jnp.maximum(y[: n - pitch], y[pitch:])
        return jnp.maximum(hp[:-1], hp[1:])

    def conv3x3_relu(slab, pitch, w_ref, b_ref):
        # slab: (b_tile*rows, Cin) bf16 zero-padded flat slab (per-image stride
        # = rows).  Tap-merged conv: concatenate the 9 shifted views along the
        # channel axis and do ONE K = 9*Cin MXU matmul.
        n = slab.shape[0]
        m = n - (2 * pitch + 2)
        cols = jnp.concatenate(
            [slab[kh * pitch + kw: kh * pitch + kw + m]
             for kh in range(3) for kw in range(3)], axis=1)
        acc = jnp.dot(cols, w_ref[...], preferred_element_type=jnp.float32)
        return jnp.maximum(acc + b_ref[...], 0.0)        # (m, Cout) f32

    def kernel(xc1_ref, w1_ref, b1_ref, w2_ref, b2_ref, w3_ref, b3_ref,
               s1_ref, s2_ref, a3_ref, f1w_ref, f1b_ref, f2w_ref, f2b_ref,
               o_ref):
        # conv1: im2col already done in the wrapper -> single K=27 matmul.
        xc1 = xc1_ref[...]
        xc1 = xc1.reshape(b_tile * M1, xc1.shape[-1])
        y1 = jnp.maximum(
            jnp.dot(xc1, w1_ref[...], preferred_element_type=jnp.float32)
            + b1_ref[...], 0.0)

        # maxpool1 + compaction into conv2's zero-padded slab (exact 0/1 bf16 matmul).
        vp1 = maxpool(y1, P1).astype(jnp.bfloat16)
        parts = [jnp.dot(s1_ref[...], vp1[b * M1: b * M1 + LS1],
                         preferred_element_type=jnp.float32).astype(jnp.bfloat16)
                 for b in range(b_tile)]
        xp2 = parts[0] if b_tile == 1 else jnp.concatenate(parts, axis=0)

        # conv2 + relu + maxpool2 + compaction.
        y2 = conv3x3_relu(xp2, Wp2, w2_ref, b2_ref)
        vp2 = maxpool(y2, Wp2).astype(jnp.bfloat16)
        parts = [jnp.dot(s2_ref[...], vp2[b * R2: b * R2 + LS2],
                         preferred_element_type=jnp.float32).astype(jnp.bfloat16)
                 for b in range(b_tile)]
        xp3 = parts[0] if b_tile == 1 else jnp.concatenate(parts, axis=0)

        # conv3 + relu + maxpool3 + global average (average folded into a3).
        y3 = conv3x3_relu(xp3, Wp3, w3_ref, b3_ref)
        vp3 = maxpool(y3, Wp3).astype(jnp.bfloat16)
        pooled = jnp.dot(a3_ref[...], vp3,
                         preferred_element_type=jnp.float32)      # (b_tile, 128)

        # MLP head (fc2 weight/bias zero-padded to 128 lanes in the wrapper).
        hid = jnp.maximum(
            jnp.dot(pooled.astype(jnp.bfloat16), f1w_ref[...],
                    preferred_element_type=jnp.float32) + f1b_ref[...], 0.0)
        logits = (jnp.dot(hid.astype(jnp.bfloat16), f2w_ref[...],
                          preferred_element_type=jnp.float32) + f2b_ref[...])
        o_ref[...] = logits.reshape(b_tile, 1, LANE)

    return kernel


# --------------------------- model ------------------------------------------

def init_params(key, input_channels=3, num_classes=NUM_CLASSES):
    """Deterministic PyTorch-style (uniform +/- 1/sqrt(fan_in)) init."""
    def conv_init(k, cin, cout):
        k1, k2 = jax.random.split(k)
        bound = 1.0 / np.sqrt(cin * 9)
        w = jax.random.uniform(k1, (3, 3, cin, cout), jnp.float32, -bound, bound)
        b = jax.random.uniform(k2, (cout,), jnp.float32, -bound, bound)
        return w, b

    def linear_init(k, fin, fout):
        k1, k2 = jax.random.split(k)
        bound = 1.0 / np.sqrt(fin)
        w = jax.random.uniform(k1, (fin, fout), jnp.float32, -bound, bound)
        b = jax.random.uniform(k2, (fout,), jnp.float32, -bound, bound)
        return w, b

    ks = jax.random.split(key, 5)
    return {
        "conv1": conv_init(ks[0], input_channels, 32),
        "conv2": conv_init(ks[1], 32, 64),
        "conv3": conv_init(ks[2], 64, 128),
        "fc1": linear_init(ks[3], 128, 64),
        "fc2": linear_init(ks[4], 64, num_classes),
    }


def simple_cnn_forward(params, x_nchw, b_tile=1):
    """Matches SimpleCNN.forward: returns (logits, None). Dropout = identity (eval)."""
    # TODO(synk): nn.Dropout train-mode RNG not modeled; eval-mode identity used.
    x = jnp.transpose(x_nchw, (0, 2, 3, 1)).astype(jnp.float32)      # NCHW -> NHWC
    N, H, W, Cin = x.shape
    assert H % 8 == 0 and W % 8 == 0, "need three 2x2 pool rounds + aligned pitch"
    assert N % b_tile == 0

    c1w, c1b = params["conv1"]
    c2w, c2b = params["conv2"]
    c3w, c3b = params["conv3"]
    f1w, f1b = params["fc1"]
    f2w, f2b = params["fc2"]
    C1, C2, C3 = c1w.shape[-1], c2w.shape[-1], c3w.shape[-1]
    NCLS = f2w.shape[-1]
    assert NCLS <= LANE

    H2, W2, H3, W3 = H // 2, W // 2, H // 4, W // 4
    P1 = W
    Wp2 = _round_up(W2 + 2, 8)
    Wp3 = _round_up(W3 + 2, 8)
    M1 = H * W
    R2 = (H2 + 2) * Wp2
    R3 = (H3 + 2) * Wp3
    n_cols3 = b_tile * R3 - 3 * Wp3 - 3      # rows of the pooled conv3 slab

    # conv1 im2col in the wrapper: lane-dense (H*W, 9*Cin) bf16 per image.
    xpad = jnp.pad(x, ((0, 0), (1, 1), (1, 1), (0, 0)))
    xcol = jnp.concatenate(
        [xpad[:, kh:kh + H, kw:kw + W, :] for kh in range(3) for kw in range(3)],
        axis=-1).reshape(N, M1, 9 * Cin).astype(jnp.bfloat16)

    # 0/1 selection / averaging constants (exact in bf16).
    s1 = jnp.asarray(_pool_embed_matrix(H, W, P1, Wp2), dtype=jnp.bfloat16)
    s2 = jnp.asarray(_pool_embed_matrix(H2, W2, Wp2, Wp3), dtype=jnp.bfloat16)
    a3 = jnp.asarray(_avg_matrix(H3, W3, Wp3, R3, b_tile, n_cols3),
                     dtype=jnp.bfloat16)

    # 2D K-major bf16 weights for the MXU; f32 biases for the epilogue.
    w1 = c1w.reshape(9 * Cin, C1).astype(jnp.bfloat16)
    w2 = c2w.reshape(9 * C1, C2).astype(jnp.bfloat16)
    w3 = c3w.reshape(9 * C2, C3).astype(jnp.bfloat16)
    f1w_k = f1w.astype(jnp.bfloat16)
    f2w_k = jnp.pad(f2w, ((0, 0), (0, LANE - NCLS))).astype(jnp.bfloat16)
    b1k = c1b.reshape(1, C1).astype(jnp.float32)
    b2k = c2b.reshape(1, C2).astype(jnp.float32)
    b3k = c3b.reshape(1, C3).astype(jnp.float32)
    f1b_k = f1b.reshape(1, -1).astype(jnp.float32)
    f2b_k = jnp.pad(f2b, (0, LANE - NCLS)).reshape(1, LANE).astype(jnp.float32)

    kernel = _make_fused_kernel(b_tile, H, W)

    def full(arr):
        shape = arr.shape
        return pl.BlockSpec(shape, lambda n: (0,) * len(shape))

    out = pl.pallas_call(
        kernel,
        out_shape=jax.ShapeDtypeStruct((N, 1, LANE), jnp.float32),
        grid=(N // b_tile,),
        in_specs=[
            pl.BlockSpec((b_tile, M1, 9 * Cin), lambda n: (n, 0, 0)),
            full(w1), full(b1k), full(w2), full(b2k), full(w3), full(b3k),
            full(s1), full(s2), full(a3),
            full(f1w_k), full(f1b_k), full(f2w_k), full(f2b_k),
        ],
        out_specs=pl.BlockSpec((b_tile, 1, LANE), lambda n: (n, 0, 0)),
        compiler_params=pltpu.CompilerParams(
            dimension_semantics=("parallel",)),
    )(xcol, w1, b1k, w2, b2k, w3, b3k, s1, s2, a3, f1w_k, f1b_k, f2w_k, f2b_k)
    return out.reshape(N, LANE)[:, :NCLS], None


# --------------------------- pure-JAX reference ------------------------------

def reference_forward(params, x_nchw):
    x = jnp.transpose(x_nchw, (0, 2, 3, 1)).astype(jnp.float32)

    def conv(y, w, b):
        y = jax.lax.conv_general_dilated(
            y, w, window_strides=(1, 1), padding="SAME",
            dimension_numbers=("NHWC", "HWIO", "NHWC"))
        return jax.nn.relu(y + b)

    def pool(y):
        n, h, w, c = y.shape
        return jnp.max(y.reshape(n, h // 2, 2, w // 2, 2, c), axis=(2, 4))

    x = pool(conv(x, *params["conv1"]))
    x = pool(conv(x, *params["conv2"]))
    x = pool(conv(x, *params["conv3"]))
    x = jnp.mean(x, axis=(1, 2))
    x = jax.nn.relu(x @ params["fc1"][0] + params["fc1"][1])
    return x @ params["fc2"][0] + params["fc2"][1]


# --------------------------- main --------------------------------------------

if __name__ == "__main__":
    key = jax.random.PRNGKey(0)
    pkey, xkey = jax.random.split(key)
    params = init_params(pkey)

    # Small NCHW input, consistent with the PyTorch module (input_channels=3).
    x = jax.random.normal(xkey, (2, 3, 16, 16), dtype=jnp.float32)

    logits, aux = jax.jit(simple_cnn_forward)(params, x)
    logits = jax.block_until_ready(logits)

    assert logits.shape == (2, NUM_CLASSES)
    assert aux is None

    ref = reference_forward(params, x)
    np.testing.assert_allclose(np.asarray(logits), np.asarray(ref),
                               rtol=2e-2, atol=2e-2)
    print("KERNEL_OK")
</pallas_src>

<mosaic_0001>
module attributes {stable_mosaic.version = 11 : i64} {
  func.func @kernel(%arg0: i32, %arg1: memref<1x256x27xbf16, #tpu.memory_space<vmem>>, %arg2: memref<27x32xbf16, #tpu.memory_space<vmem>>, %arg3: memref<1x32xf32, #tpu.memory_space<vmem>>, %arg4: memref<288x64xbf16, #tpu.memory_space<vmem>>, %arg5: memref<1x64xf32, #tpu.memory_space<vmem>>, %arg6: memref<576x128xbf16, #tpu.memory_space<vmem>>, %arg7: memref<1x128xf32, #tpu.memory_space<vmem>>, %arg8: memref<160x239xbf16, #tpu.memory_space<vmem>>, %arg9: memref<48x103xbf16, #tpu.memory_space<vmem>>, %arg10: memref<1x21xbf16, #tpu.memory_space<vmem>>, %arg11: memref<128x64xbf16, #tpu.memory_space<vmem>>, %arg12: memref<1x64xf32, #tpu.memory_space<vmem>>, %arg13: memref<64x128xbf16, #tpu.memory_space<vmem>>, %arg14: memref<1x128xf32, #tpu.memory_space<vmem>>, %arg15: memref<1x1x128xf32, #tpu.memory_space<vmem>>) attributes {dimension_semantics = [#tpu.dimension_semantics<parallel>], iteration_bounds = array<i64: 2>, scalar_prefetch = 0 : i64, scratch_operands = 0 : i64, tpu.core_type = #tpu.core_type<tc>, window_params = [{transform_indices = @transform_0, window_bounds = array<i64: 1, 256, 27>}, {pipeline_mode = #tpu.pipeline_mode<synchronous>, transform_indices = @transform_1, window_bounds = array<i64: 27, 32>}, {pipeline_mode = #tpu.pipeline_mode<synchronous>, transform_indices = @transform_2, window_bounds = array<i64: 1, 32>}, {pipeline_mode = #tpu.pipeline_mode<synchronous>, transform_indices = @transform_3, window_bounds = array<i64: 288, 64>}, {pipeline_mode = #tpu.pipeline_mode<synchronous>, transform_indices = @transform_4, window_bounds = array<i64: 1, 64>}, {pipeline_mode = #tpu.pipeline_mode<synchronous>, transform_indices = @transform_5, window_bounds = array<i64: 576, 128>}, {pipeline_mode = #tpu.pipeline_mode<synchronous>, transform_indices = @transform_6, window_bounds = array<i64: 1, 128>}, {pipeline_mode = #tpu.pipeline_mode<synchronous>, transform_indices = @transform_7, window_bounds = array<i64: 160, 239>}, {pipeline_mode = #tpu.pipeline_mode<synchronous>, transform_indices = @transform_8, window_bounds = array<i64: 48, 103>}, {pipeline_mode = #tpu.pipeline_mode<synchronous>, transform_indices = @transform_9, window_bounds = array<i64: 1, 21>}, {pipeline_mode = #tpu.pipeline_mode<synchronous>, transform_indices = @transform_10, window_bounds = array<i64: 128, 64>}, {pipeline_mode = #tpu.pipeline_mode<synchronous>, transform_indices = @transform_11, window_bounds = array<i64: 1, 64>}, {pipeline_mode = #tpu.pipeline_mode<synchronous>, transform_indices = @transform_12, window_bounds = array<i64: 64, 128>}, {pipeline_mode = #tpu.pipeline_mode<synchronous>, transform_indices = @transform_13, window_bounds = array<i64: 1, 128>}, {transform_indices = @transform_14, window_bounds = array<i64: 1, 1, 128>}]} {
    %c0 = arith.constant 0 : index
    %c0_0 = arith.constant 0 : index
    %c0_1 = arith.constant 0 : index
    %0 = vector.load %arg1[%c0, %c0_0, %c0_1] : memref<1x256x27xbf16, #tpu.memory_space<vmem>>, vector<1x256x27xbf16>
    %1 = vector.shape_cast %0 : vector<1x256x27xbf16> to vector<256x27xbf16>
    %c0_2 = arith.constant 0 : index
    %c0_3 = arith.constant 0 : index
    %2 = vector.load %arg2[%c0_2, %c0_3] : memref<27x32xbf16, #tpu.memory_space<vmem>>, vector<27x32xbf16>
    %cst = arith.constant dense<0.000000e+00> : vector<256x32xf32>
    %3 = tpu.matmul %1, %2, %cst {dimension_numbers = #tpu.dot_dimension_numbers<[1], [0], [0], [1], [0, 0, 1, 1], [], []>} : vector<256x27xbf16>, vector<27x32xbf16>, vector<256x32xf32> -> vector<256x32xf32>
    %c0_4 = arith.constant 0 : index
    %c0_5 = arith.constant 0 : index
    %4 = vector.load %arg3[%c0_4, %c0_5] : memref<1x32xf32, #tpu.memory_space<vmem>>, vector<1x32xf32>
    %5 = vector.broadcast %4 : vector<1x32xf32> to vector<256x32xf32>
    %6 = arith.addf %3, %5 : vector<256x32xf32>
    %cst_6 = arith.constant 0.000000e+00 : f32
    %7 = vector.broadcast %cst_6 : f32 to vector<256x32xf32>
    %8 = arith.maximumf %6, %7 : vector<256x32xf32>
    %9 = vector.extract_strided_slice %8 {offsets = [0, 0], sizes = [240, 32], strides = [1, 1]} : vector<256x32xf32> to vector<240x32xf32>
    %10 = vector.extract_strided_slice %8 {offsets = [16, 0], sizes = [240, 32], strides = [1, 1]} : vector<256x32xf32> to vector<240x32xf32>
    %11 = arith.maximumf %9, %10 : vector<240x32xf32>
    %12 = vector.extract_strided_slice %11 {offsets = [0, 0], sizes = [239, 32], strides = [1, 1]} : vector<240x32xf32> to vector<239x32xf32>
    %13 = vector.extract_strided_slice %11 {offsets = [1, 0], sizes = [239, 32], strides = [1, 1]} : vector<240x32xf32> to vector<239x32xf32>
    %14 = arith.maximumf %12, %13 : vector<239x32xf32>
    %15 = arith.truncf %14 : vector<239x32xf32> to vector<239x32xbf16>
    %c0_7 = arith.constant 0 : index
    %c0_8 = arith.constant 0 : index
    %16 = vector.load %arg8[%c0_7, %c0_8] : memref<160x239xbf16, #tpu.memory_space<vmem>>, vector<160x239xbf16>
    %cst_9 = arith.constant dense<0.000000e+00> : vector<160x32xf32>
    %17 = tpu.matmul %16, %15, %cst_9 {dimension_numbers = #tpu.dot_dimension_numbers<[1], [0], [0], [1], [0, 0, 1, 1], [], []>} : vector<160x239xbf16>, vector<239x32xbf16>, vector<160x32xf32> -> vector<160x32xf32>
    %18 = arith.truncf %17 : vector<160x32xf32> to vector<160x32xbf16>
    %19 = vector.extract_strided_slice %18 {offsets = [0, 0], sizes = [126, 32], strides = [1, 1]} : vector<160x32xbf16> to vector<126x32xbf16>
    %20 = vector.extract_strided_slice %18 {offsets = [1, 0], sizes = [126, 32], strides = [1, 1]} : vector<160x32xbf16> to vector<126x32xbf16>
    %21 = vector.extract_strided_slice %18 {offsets = [2, 0], sizes = [126, 32], strides = [1, 1]} : vector<160x32xbf16> to vector<126x32xbf16>
    %22 = vector.extract_strided_slice %18 {offsets = [16, 0], sizes = [126, 32], strides = [1, 1]} : vector<160x32xbf16> to vector<126x32xbf16>
    %23 = vector.extract_strided_slice %18 {offsets = [17, 0], sizes = [126, 32], strides = [1, 1]} : vector<160x32xbf16> to vector<126x32xbf16>
    %24 = vector.extract_strided_slice %18 {offsets = [18, 0], sizes = [126, 32], strides = [1, 1]} : vector<160x32xbf16> to vector<126x32xbf16>
    %25 = vector.extract_strided_slice %18 {offsets = [32, 0], sizes = [126, 32], strides = [1, 1]} : vector<160x32xbf16> to vector<126x32xbf16>
    %26 = vector.extract_strided_slice %18 {offsets = [33, 0], sizes = [126, 32], strides = [1, 1]} : vector<160x32xbf16> to vector<126x32xbf16>
    %27 = vector.extract_strided_slice %18 {offsets = [34, 0], sizes = [126, 32], strides = [1, 1]} : vector<160x32xbf16> to vector<126x32xbf16>
    %28 = tpu.concatenate %19, %20, %21, %22, %23, %24, %25, %26, %27 in 1 : vector<126x32xbf16>, vector<126x32xbf16>, vector<126x32xbf16>, vector<126x32xbf16>, vector<126x32xbf16>, vector<126x32xbf16>, vector<126x32xbf16>, vector<126x32xbf16>, vector<126x32xbf16> -> vector<126x288xbf16>
    %c0_10 = arith.constant 0 : index
    %c0_11 = arith.constant 0 : index
    %29 = vector.load %arg4[%c0_10, %c0_11] : memref<288x64xbf16, #tpu.memory_space<vmem>>, vector<288x64xbf16>
    %cst_12 = arith.constant dense<0.000000e+00> : vector<126x64xf32>
    %30 = tpu.matmul %28, %29, %cst_12 {dimension_numbers = #tpu.dot_dimension_numbers<[1], [0], [0], [1], [0, 0, 1, 1], [], []>} : vector<126x288xbf16>, vector<288x64xbf16>, vector<126x64xf32> -> vector<126x64xf32>
    %c0_13 = arith.constant 0 : index
    %c0_14 = arith.constant 0 : index
    %31 = vector.load %arg5[%c0_13, %c0_14] : memref<1x64xf32, #tpu.memory_space<vmem>>, vector<1x64xf32>
    %32 = vector.broadcast %31 : vector<1x64xf32> to vector<126x64xf32>
    %33 = arith.addf %30, %32 : vector<126x64xf32>
    %cst_15 = arith.constant 0.000000e+00 : f32
    %34 = vector.broadcast %cst_15 : f32 to vector<126x64xf32>
    %35 = arith.maximumf %33, %34 : vector<126x64xf32>
    %36 = vector.extract_strided_slice %35 {offsets = [0, 0], sizes = [110, 64], strides = [1, 1]} : vector<126x64xf32> to vector<110x64xf32>
    %37 = vector.extract_strided_slice %35 {offsets = [16, 0], sizes = [110, 64], strides = [1, 1]} : vector<126x64xf32> to vector<110x64xf32>
    %38 = arith.maximumf %36, %37 : vector<110x64xf32>
    %39 = vector.extract_strided_slice %38 {offsets = [0, 0], sizes = [109, 64], strides = [1, 1]} : vector<110x64xf32> to vector<109x64xf32>
    %40 = vector.extract_strided_slice %38 {offsets = [1, 0], sizes = [109, 64], strides = [1, 1]} : vector<110x64xf32> to vector<109x64xf32>
    %41 = arith.maximumf %39, %40 : vector<109x64xf32>
    %42 = arith.truncf %41 : vector<109x64xf32> to vector<109x64xbf16>
    %c0_16 = arith.constant 0 : index
    %c0_17 = arith.constant 0 : index
    %43 = vector.load %arg9[%c0_16, %c0_17] : memref<48x103xbf16, #tpu.memory_space<vmem>>, vector<48x103xbf16>
    %44 = vector.extract_strided_slice %42 {offsets = [0, 0], sizes = [103, 64], strides = [1, 1]} : vector<109x64xbf16> to vector<103x64xbf16>
    %cst_18 = arith.constant dense<0.000000e+00> : vector<48x64xf32>
    %45 = tpu.matmul %43, %44, %cst_18 {dimension_numbers = #tpu.dot_dimension_numbers<[1], [0], [0], [1], [0, 0, 1, 1], [], []>} : vector<48x103xbf16>, vector<103x64xbf16>, vector<48x64xf32> -> vector<48x64xf32>
    %46 = arith.truncf %45 : vector<48x64xf32> to vector<48x64xbf16>
    %47 = vector.extract_strided_slice %46 {offsets = [0, 0], sizes = [30, 64], strides = [1, 1]} : vector<48x64xbf16> to vector<30x64xbf16>
    %48 = vector.extract_strided_slice %46 {offsets = [1, 0], sizes = [30, 64], strides = [1, 1]} : vector<48x64xbf16> to vector<30x64xbf16>
    %49 = vector.extract_strided_slice %46 {offsets = [2, 0], sizes = [30, 64], strides = [1, 1]} : vector<48x64xbf16> to vector<30x64xbf16>
    %50 = vector.extract_strided_slice %46 {offsets = [8, 0], sizes = [30, 64], strides = [1, 1]} : vector<48x64xbf16> to vector<30x64xbf16>
    %51 = vector.extract_strided_slice %46 {offsets = [9, 0], sizes = [30, 64], strides = [1, 1]} : vector<48x64xbf16> to vector<30x64xbf16>
    %52 = vector.extract_strided_slice %46 {offsets = [10, 0], sizes = [30, 64], strides = [1, 1]} : vector<48x64xbf16> to vector<30x64xbf16>
    %53 = vector.extract_strided_slice %46 {offsets = [16, 0], sizes = [30, 64], strides = [1, 1]} : vector<48x64xbf16> to vector<30x64xbf16>
    %54 = vector.extract_strided_slice %46 {offsets = [17, 0], sizes = [30, 64], strides = [1, 1]} : vector<48x64xbf16> to vector<30x64xbf16>
    %55 = vector.extract_strided_slice %46 {offsets = [18, 0], sizes = [30, 64], strides = [1, 1]} : vector<48x64xbf16> to vector<30x64xbf16>
    %56 = tpu.concatenate %47, %48, %49, %50, %51, %52, %53, %54, %55 in 1 : vector<30x64xbf16>, vector<30x64xbf16>, vector<30x64xbf16>, vector<30x64xbf16>, vector<30x64xbf16>, vector<30x64xbf16>, vector<30x64xbf16>, vector<30x64xbf16>, vector<30x64xbf16> -> vector<30x576xbf16>
    %c0_19 = arith.constant 0 : index
    %c0_20 = arith.constant 0 : index
    %57 = vector.load %arg6[%c0_19, %c0_20] : memref<576x128xbf16, #tpu.memory_space<vmem>>, vector<576x128xbf16>
    %cst_21 = arith.constant dense<0.000000e+00> : vector<30x128xf32>
    %58 = tpu.matmul %56, %57, %cst_21 {dimension_numbers = #tpu.dot_dimension_numbers<[1], [0], [0], [1], [0, 0, 1, 1], [], []>} : vector<30x576xbf16>, vector<576x128xbf16>, vector<30x128xf32> -> vector<30x128xf32>
    %c0_22 = arith.constant 0 : index
    %c0_23 = arith.constant 0 : index
    %59 = vector.load %arg7[%c0_22, %c0_23] : memref<1x128xf32, #tpu.memory_space<vmem>>, vector<1x128xf32>
    %60 = vector.broadcast %59 : vector<1x128xf32> to vector<30x128xf32>
    %61 = arith.addf %58, %60 : vector<30x128xf32>
    %cst_24 = arith.constant 0.000000e+00 : f32
    %62 = vector.broadcast %cst_24 : f32 to vector<30x128xf32>
    %63 = arith.maximumf %61, %62 : vector<30x128xf32>
    %64 = vector.extract_strided_slice %63 {offsets = [0, 0], sizes = [22, 128], strides = [1, 1]} : vector<30x128xf32> to vector<22x128xf32>
    %65 = vector.extract_strided_slice %63 {offsets = [8, 0], sizes = [22, 128], strides = [1, 1]} : vector<30x128xf32> to vector<22x128xf32>
    %66 = arith.maximumf %64, %65 : vector<22x128xf32>
    %67 = vector.extract_strided_slice %66 {offsets = [0, 0], sizes = [21, 128], strides = [1, 1]} : vector<22x128xf32> to vector<21x128xf32>
    %68 = vector.extract_strided_slice %66 {offsets = [1, 0], sizes = [21, 128], strides = [1, 1]} : vector<22x128xf32> to vector<21x128xf32>
    %69 = arith.maximumf %67, %68 : vector<21x128xf32>
    %70 = arith.truncf %69 : vector<21x128xf32> to vector<21x128xbf16>
    %c0_25 = arith.constant 0 : index
    %c0_26 = arith.constant 0 : index
    %71 = vector.load %arg10[%c0_25, %c0_26] : memref<1x21xbf16, #tpu.memory_space<vmem>>, vector<1x21xbf16>
    %cst_27 = arith.constant dense<0.000000e+00> : vector<1x128xf32>
    %72 = tpu.matmul %71, %70, %cst_27 {dimension_numbers = #tpu.dot_dimension_numbers<[1], [0], [0], [1], [0, 0, 1, 1], [], []>} : vector<1x21xbf16>, vector<21x128xbf16>, vector<1x128xf32> -> vector<1x128xf32>
    %73 = arith.truncf %72 : vector<1x128xf32> to vector<1x128xbf16>
    %c0_28 = arith.constant 0 : index
    %c0_29 = arith.constant 0 : index
    %74 = vector.load %arg11[%c0_28, %c0_29] : memref<128x64xbf16, #tpu.memory_space<vmem>>, vector<128x64xbf16>
    %cst_30 = arith.constant dense<0.000000e+00> : vector<1x64xf32>
    %75 = tpu.matmul %73, %74, %cst_30 {dimension_numbers = #tpu.dot_dimension_numbers<[1], [0], [0], [1], [0, 0, 1, 1], [], []>} : vector<1x128xbf16>, vector<128x64xbf16>, vector<1x64xf32> -> vector<1x64xf32>
    %c0_31 = arith.constant 0 : index
    %c0_32 = arith.constant 0 : index
    %76 = vector.load %arg12[%c0_31, %c0_32] : memref<1x64xf32, #tpu.memory_space<vmem>>, vector<1x64xf32>
    %77 = arith.addf %75, %76 : vector<1x64xf32>
    %cst_33 = arith.constant 0.000000e+00 : f32
    %78 = vector.broadcast %cst_33 : f32 to vector<1x64xf32>
    %79 = arith.maximumf %77, %78 : vector<1x64xf32>
    %80 = arith.truncf %79 : vector<1x64xf32> to vector<1x64xbf16>
    %c0_34 = arith.constant 0 : index
    %c0_35 = arith.constant 0 : index
    %81 = vector.load %arg13[%c0_34, %c0_35] : memref<64x128xbf16, #tpu.memory_space<vmem>>, vector<64x128xbf16>
    %cst_36 = arith.constant dense<0.000000e+00> : vector<1x128xf32>
    %82 = tpu.matmul %80, %81, %cst_36 {dimension_numbers = #tpu.dot_dimension_numbers<[1], [0], [0], [1], [0, 0, 1, 1], [], []>} : vector<1x64xbf16>, vector<64x128xbf16>, vector<1x128xf32> -> vector<1x128xf32>
    %c0_37 = arith.constant 0 : index
    %c0_38 = arith.constant 0 : index
    %83 = vector.load %arg14[%c0_37, %c0_38] : memref<1x128xf32, #tpu.memory_space<vmem>>, vector<1x128xf32>
    %84 = arith.addf %82, %83 : vector<1x128xf32>
    %85 = vector.shape_cast %84 : vector<1x128xf32> to vector<1x1x128xf32>
    %c0_39 = arith.constant 0 : index
    %c0_40 = arith.constant 0 : index
    %c0_41 = arith.constant 0 : index
    %86 = vector.load %arg15[%c0_39, %c0_40, %c0_41] : memref<1x1x128xf32, #tpu.memory_space<vmem>>, vector<1x1x128xf32>
    tpu.vector_store %arg15[%c0_39, %c0_40, %c0_41], %85 {strides = array<i32>} : memref<1x1x128xf32, #tpu.memory_space<vmem>>, vector<1x1x128xf32>,
    return
  }
  func.func @transform_0(%arg0: i32) -> (i32, i32, i32) {
    %c0_i32 = arith.constant 0 : i32
    %c0_i32_0 = arith.constant 0 : i32
    %c0_i32_1 = arith.constant 0 : i32
    return %arg0, %c0_i32, %c0_i32_0 : i32, i32, i32
  }
  func.func @transform_1(%arg0: i32) -> (i32, i32) {
    %c0_i32 = arith.constant 0 : i32
    %c0_i32_0 = arith.constant 0 : i32
    %c0_i32_1 = arith.constant 0 : i32
    return %c0_i32, %c0_i32_0 : i32, i32
  }
  func.func @transform_2(%arg0: i32) -> (i32, i32) {
    %c0_i32 = arith.constant 0 : i32
    %c0_i32_0 = arith.constant 0 : i32
    %c0_i32_1 = arith.constant 0 : i32
    return %c0_i32, %c0_i32_0 : i32, i32
  }
  func.func @transform_3(%arg0: i32) -> (i32, i32) {
    %c0_i32 = arith.constant 0 : i32
    %c0_i32_0 = arith.constant 0 : i32
    %c0_i32_1 = arith.constant 0 : i32
    return %c0_i32, %c0_i32_0 : i32, i32
  }
  func.func @transform_4(%arg0: i32) -> (i32, i32) {
    %c0_i32 = arith.constant 0 : i32
    %c0_i32_0 = arith.constant 0 : i32
    %c0_i32_1 = arith.constant 0 : i32
    return %c0_i32, %c0_i32_0 : i32, i32
  }
  func.func @transform_5(%arg0: i32) -> (i32, i32) {
    %c0_i32 = arith.constant 0 : i32
    %c0_i32_0 = arith.constant 0 : i32
    %c0_i32_1 = arith.constant 0 : i32
    return %c0_i32, %c0_i32_0 : i32, i32
  }
  func.func @transform_6(%arg0: i32) -> (i32, i32) {
    %c0_i32 = arith.constant 0 : i32
    %c0_i32_0 = arith.constant 0 : i32
    %c0_i32_1 = arith.constant 0 : i32
    return %c0_i32, %c0_i32_0 : i32, i32
  }
  func.func @transform_7(%arg0: i32) -> (i32, i32) {
    %c0_i32 = arith.constant 0 : i32
    %c0_i32_0 = arith.constant 0 : i32
    %c0_i32_1 = arith.constant 0 : i32
    return %c0_i32, %c0_i32_0 : i32, i32
  }
  func.func @transform_8(%arg0: i32) -> (i32, i32) {
    %c0_i32 = arith.constant 0 : i32
    %c0_i32_0 = arith.constant 0 : i32
    %c0_i32_1 = arith.constant 0 : i32
    return %c0_i32, %c0_i32_0 : i32, i32
  }
  func.func @transform_9(%arg0: i32) -> (i32, i32) {
    %c0_i32 = arith.constant 0 : i32
    %c0_i32_0 = arith.constant 0 : i32
    %c0_i32_1 = arith.constant 0 : i32
    return %c0_i32, %c0_i32_0 : i32, i32
  }
  func.func @transform_10(%arg0: i32) -> (i32, i32) {
    %c0_i32 = arith.constant 0 : i32
    %c0_i32_0 = arith.constant 0 : i32
    %c0_i32_1 = arith.constant 0 : i32
    return %c0_i32, %c0_i32_0 : i32, i32
  }
  func.func @transform_11(%arg0: i32) -> (i32, i32) {
    %c0_i32 = arith.constant 0 : i32
    %c0_i32_0 = arith.constant 0 : i32
    %c0_i32_1 = arith.constant 0 : i32
    return %c0_i32, %c0_i32_0 : i32, i32
  }
  func.func @transform_12(%arg0: i32) -> (i32, i32) {
    %c0_i32 = arith.constant 0 : i32
    %c0_i32_0 = arith.constant 0 : i32
    %c0_i32_1 = arith.constant 0 : i32
    return %c0_i32, %c0_i32_0 : i32, i32
  }
  func.func @transform_13(%arg0: i32) -> (i32, i32) {
    %c0_i32 = arith.constant 0 : i32
    %c0_i32_0 = arith.constant 0 : i32
    %c0_i32_1 = arith.constant 0 : i32
    return %c0_i32, %c0_i32_0 : i32, i32
  }
  func.func @transform_14(%arg0: i32) -> (i32, i32, i32) {
    %c0_i32 = arith.constant 0 : i32
    %c0_i32_0 = arith.constant 0 : i32
    %c0_i32_1 = arith.constant 0 : i32
    return %arg0, %c0_i32, %c0_i32_0 : i32, i32, i32
  }
}

</mosaic_0001>

<llo_original>
// kernel: simple_cnn_forward.1
$region0: #{simple_cnn_forward.1}
  #allocation0 [shape = 'u32[]', space=smem, size = 0x4, offset = 0x4, fixed_abs, tag = 'smem constant byte address 0x4 - core index']
  #allocation1 [shape = 'u32[144,128]{1,0:T(1,128)}', space=vmem, size = 0x12000, scoped, tag = 'internal scratch']
  %s0 = inlined_call_operand.vmem [shape: bf16[2,256,27], index: 0, kind: input, shape index: {}]
  %s1 = inlined_call_operand.vmem [shape: bf16[27,32], index: 1, kind: input, shape index: {}]
  %s2 = inlined_call_operand.vmem [shape: f32[1,32], index: 2, kind: input, shape index: {}]
  %s3 = inlined_call_operand.vmem [shape: bf16[288,64], index: 3, kind: input, shape index: {}]
  %s4 = inlined_call_operand.vmem [shape: f32[1,64], index: 4, kind: input, shape index: {}]
  %s5 = inlined_call_operand.vmem [shape: bf16[576,128], index: 5, kind: input, shape index: {}]
  %s6 = inlined_call_operand.vmem [shape: f32[1,128], index: 6, kind: input, shape index: {}]
  %s7 = inlined_call_operand.vmem [shape: bf16[160,239], index: 7, kind: input, shape index: {}]
  %s8 = inlined_call_operand.vmem [shape: bf16[48,103], index: 8, kind: input, shape index: {}]
  %s9 = inlined_call_operand.vmem [shape: bf16[1,21], index: 9, kind: input, shape index: {}]
  %s10 = inlined_call_operand.vmem [shape: bf16[128,64], index: 10, kind: input, shape index: {}]
  %s11 = inlined_call_operand.vmem [shape: f32[1,64], index: 11, kind: input, shape index: {}]
  %s12 = inlined_call_operand.vmem [shape: bf16[64,128], index: 12, kind: input, shape index: {}]
  %s13 = inlined_call_operand.vmem [shape: f32[1,128], index: 13, kind: input, shape index: {}]
  %s14 = inlined_call_operand.hbm [shape: f32[2,1,128], index: 14, kind: output, shape index: {}]
  %s15 = sld [smem:[#allocation0]]
  $region89: #{simple_cnn_forward.1} parent=0
    _
  %s17 = ssub.s32 1, %s15
  %s18 = scalar_select 0, %s17, %s15
  $region1: #{simple_cnn_forward.1} parent=0
    #allocation2 [shape = 'u8[1024]{0}', space=vmem, size = 0x400, scoped, tag = 'output window, operand 0']
    #allocation3 [shape = 's32[2]{0}', space=sflag, size = 0x8, scoped, tag = 'scoped memory for simple_cnn_forward.1']
    %19 = vsyncpa [#allocation3], 0
    %s20 = scalar_lea.sflag [#allocation3], 1
    %21 = vsyncpa %s20, 0
    loop: start=0, step=1, limit=4
    $region2: #{simple_cnn_forward.1} parent=1 // loop_pre_header
      _
    $region3: #{simple_cnn_forward.1} parent=1 // loop_header
      %s23 = sphi 0, %s27
      %p24 = scmp.ge.s32.totalorder %s23, 4
      %s33 = sphi 0, %s35
      %s36 = sphi 0, %s33
      %s37 = sphi 0, %s36
      %s53 = sphi 0, %s37
      %s57 = sphi 0, %s57
      %s59 = sphi 0, %s57
      %s60 = sphi 0, %s59
      %s74 = sphi 0, %s60
      %s78 = sphi 0, %s78
      %s80 = sphi 0, %s78
      %s81 = sphi 0, %s80
      %s95 = sphi 0, %s81
      %s99 = sphi 0, %s99
      %s101 = sphi 0, %s99
      %s102 = sphi 0, %s101
      %s116 = sphi 0, %s102
      %s120 = sphi 0, %s120
      %s122 = sphi 0, %s120
      %s123 = sphi 0, %s122
      %s137 = sphi 0, %s123
      %s141 = sphi 0, %s141
      %s143 = sphi 0, %s141
      %s144 = sphi 0, %s143
      %s158 = sphi 0, %s144
      %s162 = sphi 0, %s162
      %s164 = sphi 0, %s162
      %s165 = sphi 0, %s164
      %s179 = sphi 0, %s165
      %s183 = sphi 0, %s183
      %s185 = sphi 0, %s183
      %s186 = sphi 0, %s185
      %s200 = sphi 0, %s186
      %s204 = sphi 0, %s204
      %s206 = sphi 0, %s204
      %s207 = sphi 0, %s206
      %s221 = sphi 0, %s207
      %s225 = sphi 0, %s225
      %s227 = sphi 0, %s225
      %s228 = sphi 0, %s227
      %s242 = sphi 0, %s228
      %s246 = sphi 0, %s246
      %s248 = sphi 0, %s246
      %s249 = sphi 0, %s248
      %s263 = sphi 0, %s249
      %s267 = sphi 0, %s267
      %s269 = sphi 0, %s267
      %s270 = sphi 0, %s269
      %s284 = sphi 0, %s270
      %s288 = sphi 0, %s288
      %s290 = sphi 0, %s288
      %s291 = sphi 0, %s290
      %s305 = sphi 0, %s291
      %s309 = sphi 0, %s309
      %s311 = sphi 0, %s309
      %s312 = sphi 0, %s311
      %s326 = sphi 0, %s312
      %s332 = sphi 0, %s334
      %s335 = sphi 0, %s332
      %s336 = sphi 0, %s335
      %s352 = sphi 0, %s336
    $region4: #{simple_cnn_forward.1} parent=1 // loop_header_branch
      %26 = sbr.rel (%p24) target = $region8
    $region5: #{simple_cnn_forward.1} parent=1 // loop_body
      %s28 = ssub.s32 %s23, 1
      %s29 = ssub.s32 %s23, 2
      %s30 = sadd.s32 %s23, 1
      %s31 = ssub.s32 %s23, %s30
      %p32 = scmp.eq.s32.totalorder %s31, 0
      %s34 = sadd.s32 %s33, 1
      %s35 = scalar_select %p32, %s33, %s34
      %p38 = pneg %p32
      %p39 = scmp.eq.s32.totalorder %s23, 1
      %p40 = por %p38, %p39
      %p41 = scmp.ne.s32.totalorder %s33, %s36
      %p42 = scmp.eq.s32.totalorder %s23, 0
      %p43 = por %p41, %p42
      %p44 = scmp.ne.s32.totalorder %s33, %s36
      %p45 = scmp.eq.s32.totalorder %s28, 1
      %p46 = por %p44, %p45
      %p47 = scmp.ne.s32.totalorder %s36, %s37
      %p48 = scmp.eq.s32.totalorder %s28, 0
      %p49 = por %p47, %p48
      %p50 = scmp.ne.s32.totalorder %s36, %s37
      %p51 = scmp.eq.s32.totalorder %s29, 1
      %p52 = por %p50, %p51
      %p54 = scmp.ne.s32.totalorder %s37, %s53
      %p55 = scmp.eq.s32.totalorder %s29, 0
      %p56 = por %p54, %p55
      %s58 = sadd.s32 %s57, 1
      %p61 = scmp.eq.s32.totalorder %s23, 1
      %p62 = scmp.ne.s32.totalorder %s57, %s59
      %p63 = scmp.eq.s32.totalorder %s23, 0
      %p64 = por %p62, %p63
      %p65 = scmp.ne.s32.totalorder %s57, %s59
      %p66 = scmp.eq.s32.totalorder %s28, 1
      %p67 = por %p65, %p66
      %p68 = scmp.ne.s32.totalorder %s59, %s60
      %p69 = scmp.eq.s32.totalorder %s28, 0
      %p70 = por %p68, %p69
      %p71 = scmp.ne.s32.totalorder %s59, %s60
      %p72 = scmp.eq.s32.totalorder %s29, 1
      %p73 = por %p71, %p72
      %p75 = scmp.ne.s32.totalorder %s60, %s74
      %p76 = scmp.eq.s32.totalorder %s29, 0
      %p77 = por %p75, %p76
      %s79 = sadd.s32 %s78, 1
      %p82 = scmp.eq.s32.totalorder %s23, 1
      %p83 = scmp.ne.s32.totalorder %s78, %s80
      %p84 = scmp.eq.s32.totalorder %s23, 0
      %p85 = por %p83, %p84
      %p86 = scmp.ne.s32.totalorder %s78, %s80
      %p87 = scmp.eq.s32.totalorder %s28, 1
      %p88 = por %p86, %p87
      %p89 = scmp.ne.s32.totalorder %s80, %s81
      %p90 = scmp.eq.s32.totalorder %s28, 0
      %p91 = por %p89, %p90
      %p92 = scmp.ne.s32.totalorder %s80, %s81
      %p93 = scmp.eq.s32.totalorder %s29, 1
      %p94 = por %p92, %p93
      %p96 = scmp.ne.s32.totalorder %s81, %s95
      %p97 = scmp.eq.s32.totalorder %s29, 0
      %p98 = por %p96, %p97
      %s100 = sadd.s32 %s99, 1
      %p103 = scmp.eq.s32.totalorder %s23, 1
      %p104 = scmp.ne.s32.totalorder %s99, %s101
      %p105 = scmp.eq.s32.totalorder %s23, 0
      %p106 = por %p104, %p105
      %p107 = scmp.ne.s32.totalorder %s99, %s101
      %p108 = scmp.eq.s32.totalorder %s28, 1
      %p109 = por %p107, %p108
      %p110 = scmp.ne.s32.totalorder %s101, %s102
      %p111 = scmp.eq.s32.totalorder %s28, 0
      %p112 = por %p110, %p111
      %p113 = scmp.ne.s32.totalorder %s101, %s102
      %p114 = scmp.eq.s32.totalorder %s29, 1
      %p115 = por %p113, %p114
      %p117 = scmp.ne.s32.totalorder %s102, %s116
      %p118 = scmp.eq.s32.totalorder %s29, 0
      %p119 = por %p117, %p118
      %s121 = sadd.s32 %s120, 1
      %p124 = scmp.eq.s32.totalorder %s23, 1
      %p125 = scmp.ne.s32.totalorder %s120, %s122
      %p126 = scmp.eq.s32.totalorder %s23, 0
      %p127 = por %p125, %p126
      %p128 = scmp.ne.s32.totalorder %s120, %s122
      %p129 = scmp.eq.s32.totalorder %s28, 1
      %p130 = por %p128, %p129
      %p131 = scmp.ne.s32.totalorder %s122, %s123
      %p132 = scmp.eq.s32.totalorder %s28, 0
      %p133 = por %p131, %p132
      %p134 = scmp.ne.s32.totalorder %s122, %s123
      %p135 = scmp.eq.s32.totalorder %s29, 1
      %p136 = por %p134, %p135
      %p138 = scmp.ne.s32.totalorder %s123, %s137
      %p139 = scmp.eq.s32.totalorder %s29, 0
      %p140 = por %p138, %p139
      %s142 = sadd.s32 %s141, 1
      %p145 = scmp.eq.s32.totalorder %s23, 1
      %p146 = scmp.ne.s32.totalorder %s141, %s143
      %p147 = scmp.eq.s32.totalorder %s23, 0
      %p148 = por %p146, %p147
      %p149 = scmp.ne.s32.totalorder %s141, %s143
      %p150 = scmp.eq.s32.totalorder %s28, 1
      %p151 = por %p149, %p150
      %p152 = scmp.ne.s32.totalorder %s143, %s144
      %p153 = scmp.eq.s32.totalorder %s28, 0
      %p154 = por %p152, %p153
      %p155 = scmp.ne.s32.totalorder %s143, %s144
      %p156 = scmp.eq.s32.totalorder %s29, 1
      %p157 = por %p155, %p156
      %p159 = scmp.ne.s32.totalorder %s144, %s158
      %p160 = scmp.eq.s32.totalorder %s29, 0
      %p161 = por %p159, %p160
      %s163 = sadd.s32 %s162, 1
      %p166 = scmp.eq.s32.totalorder %s23, 1
      %p167 = scmp.ne.s32.totalorder %s162, %s164
      %p168 = scmp.eq.s32.totalorder %s23, 0
      %p169 = por %p167, %p168
      %p170 = scmp.ne.s32.totalorder %s162, %s164
      %p171 = scmp.eq.s32.totalorder %s28, 1
      %p172 = por %p170, %p171
      %p173 = scmp.ne.s32.totalorder %s164, %s165
      %p174 = scmp.eq.s32.totalorder %s28, 0
      %p175 = por %p173, %p174
      %p176 = scmp.ne.s32.totalorder %s164, %s165
      %p177 = scmp.eq.s32.totalorder %s29, 1
      %p178 = por %p176, %p177
      %p180 = scmp.ne.s32.totalorder %s165, %s179
      %p181 = scmp.eq.s32.totalorder %s29, 0
      %p182 = por %p180, %p181
      %s184 = sadd.s32 %s183, 1
      %p187 = scmp.eq.s32.totalorder %s23, 1
      %p188 = scmp.ne.s32.totalorder %s183, %s185
      %p189 = scmp.eq.s32.totalorder %s23, 0
      %p190 = por %p188, %p189
      %p191 = scmp.ne.s32.totalorder %s183, %s185
      %p192 = scmp.eq.s32.totalorder %s28, 1
      %p193 = por %p191, %p192
      %p194 = scmp.ne.s32.totalorder %s185, %s186
      %p195 = scmp.eq.s32.totalorder %s28, 0
      %p196 = por %p194, %p195
      %p197 = scmp.ne.s32.totalorder %s185, %s186
      %p198 = scmp.eq.s32.totalorder %s29, 1
      %p199 = por %p197, %p198
      %p201 = scmp.ne.s32.totalorder %s186, %s200
      %p202 = scmp.eq.s32.totalorder %s29, 0
      %p203 = por %p201, %p202
      %s205 = sadd.s32 %s204, 1
      %p208 = scmp.eq.s32.totalorder %s23, 1
      %p209 = scmp.ne.s32.totalorder %s204, %s206
      %p210 = scmp.eq.s32.totalorder %s23, 0
      %p211 = por %p209, %p210
      %p212 = scmp.ne.s32.totalorder %s204, %s206
      %p213 = scmp.eq.s32.totalorder %s28, 1
      %p214 = por %p212, %p213
      %p215 = scmp.ne.s32.totalorder %s206, %s207
      %p216 = scmp.eq.s32.totalorder %s28, 0
      %p217 = por %p215, %p216
      %p218 = scmp.ne.s32.totalorder %s206, %s207
      %p219 = scmp.eq.s32.totalorder %s29, 1
      %p220 = por %p218, %p219
      %p222 = scmp.ne.s32.totalorder %s207, %s221
      %p223 = scmp.eq.s32.totalorder %s29, 0
      %p224 = por %p222, %p223
      %s226 = sadd.s32 %s225, 1
      %p229 = scmp.eq.s32.totalorder %s23, 1
      %p230 = scmp.ne.s32.totalorder %s225, %s227
      %p231 = scmp.eq.s32.totalorder %s23, 0
      %p232 = por %p230, %p231
      %p233 = scmp.ne.s32.totalorder %s225, %s227
      %p234 = scmp.eq.s32.totalorder %s28, 1
      %p235 = por %p233, %p234
      %p236 = scmp.ne.s32.totalorder %s227, %s228
      %p237 = scmp.eq.s32.totalorder %s28, 0
      %p238 = por %p236, %p237
      %p239 = scmp.ne.s32.totalorder %s227, %s228
      %p240 = scmp.eq.s32.totalorder %s29, 1
      %p241 = por %p239, %p240
      %p243 = scmp.ne.s32.totalorder %s228, %s242
      %p244 = scmp.eq.s32.totalorder %s29, 0
      %p245 = por %p243, %p244
      %s247 = sadd.s32 %s246, 1
      %p250 = scmp.eq.s32.totalorder %s23, 1
      %p251 = scmp.ne.s32.totalorder %s246, %s248
      %p252 = scmp.eq.s32.totalorder %s23, 0
      %p253 = por %p251, %p252
      %p254 = scmp.ne.s32.totalorder %s246, %s248
      %p255 = scmp.eq.s32.totalorder %s28, 1
      %p256 = por %p254, %p255
      %p257 = scmp.ne.s32.totalorder %s248, %s249
      %p258 = scmp.eq.s32.totalorder %s28, 0
      %p259 = por %p257, %p258
      %p260 = scmp.ne.s32.totalorder %s248, %s249
      %p261 = scmp.eq.s32.totalorder %s29, 1
      %p262 = por %p260, %p261
      %p264 = scmp.ne.s32.totalorder %s249, %s263
      %p265 = scmp.eq.s32.totalorder %s29, 0
      %p266 = por %p264, %p265
      %s268 = sadd.s32 %s267, 1
      %p271 = scmp.eq.s32.totalorder %s23, 1
      %p272 = scmp.ne.s32.totalorder %s267, %s269
      %p273 = scmp.eq.s32.totalorder %s23, 0
      %p274 = por %p272, %p273
      %p275 = scmp.ne.s32.totalorder %s267, %s269
      %p276 = scmp.eq.s32.totalorder %s28, 1
      %p277 = por %p275, %p276
      %p278 = scmp.ne.s32.totalorder %s269, %s270
      %p279 = scmp.eq.s32.totalorder %s28, 0
      %p280 = por %p278, %p279
      %p281 = scmp.ne.s32.totalorder %s269, %s270
      %p282 = scmp.eq.s32.totalorder %s29, 1
      %p283 = por %p281, %p282
      %p285 = scmp.ne.s32.totalorder %s270, %s284
      %p286 = scmp.eq.s32.totalorder %s29, 0
      %p287 = por %p285, %p286
      %s289 = sadd.s32 %s288, 1
      %p292 = scmp.eq.s32.totalorder %s23, 1
      %p293 = scmp.ne.s32.totalorder %s288, %s290
      %p294 = scmp.eq.s32.totalorder %s23, 0
      %p295 = por %p293, %p294
      %p296 = scmp.ne.s32.totalorder %s288, %s290
      %p297 = scmp.eq.s32.totalorder %s28, 1
      %p298 = por %p296, %p297
      %p299 = scmp.ne.s32.totalorder %s290, %s291
      %p300 = scmp.eq.s32.totalorder %s28, 0
      %p301 = por %p299, %p300
      %p302 = scmp.ne.s32.totalorder %s290, %s291
      %p303 = scmp.eq.s32.totalorder %s29, 1
      %p304 = por %p302, %p303
      %p306 = scmp.ne.s32.totalorder %s291, %s305
      %p307 = scmp.eq.s32.totalorder %s29, 0
      %p308 = por %p306, %p307
      %s310 = sadd.s32 %s309, 1
      %p313 = scmp.eq.s32.totalorder %s23, 1
      %p314 = scmp.ne.s32.totalorder %s309, %s311
      %p315 = scmp.eq.s32.totalorder %s23, 0
      %p316 = por %p314, %p315
      %p317 = scmp.ne.s32.totalorder %s309, %s311
      %p318 = scmp.eq.s32.totalorder %s28, 1
      %p319 = por %p317, %p318
      %p320 = scmp.ne.s32.totalorder %s311, %s312
      %p321 = scmp.eq.s32.totalorder %s28, 0
      %p322 = por %p320, %p321
      %p323 = scmp.ne.s32.totalorder %s311, %s312
      %p324 = scmp.eq.s32.totalorder %s29, 1
      %p325 = por %p323, %p324
      %p327 = scmp.ne.s32.totalorder %s312, %s326
      %p328 = scmp.eq.s32.totalorder %s29, 0
      %p329 = por %p327, %p328
      %s330 = ssub.s32 %s23, %s30
      %p331 = scmp.eq.s32.totalorder %s330, 0
      %s333 = sadd.s32 %s332, 1
      %s334 = scalar_select %p331, %s332, %s333
      %p337 = pneg %p331
      %p338 = scmp.eq.s32.totalorder %s23, 1
      %p339 = por %p337, %p338
      %p340 = scmp.ne.s32.totalorder %s332, %s335
      %p341 = scmp.eq.s32.totalorder %s23, 0
      %p342 = por %p340, %p341
      %p343 = scmp.ne.s32.totalorder %s332, %s335
      %p344 = scmp.eq.s32.totalorder %s28, 1
      %p345 = por %p343, %p344
      %p346 = scmp.ne.s32.totalorder %s335, %s336
      %p347 = scmp.eq.s32.totalorder %s28, 0
      %p348 = por %p346, %p347
      %p349 = scmp.ne.s32.totalorder %s335, %s336
      %p350 = scmp.eq.s32.totalorder %s29, 1
      %p351 = por %p349, %p350
      %p353 = scmp.ne.s32.totalorder %s336, %s352
      %p354 = scmp.eq.s32.totalorder %s29, 0
      %p355 = por %p353, %p354
      %p356 = scmp.le.s32.totalorder 1, %s23
      %p357 = scmp.lt.s32.totalorder %s23, 3
      %p358 = pnand %p356, %p357
      %p359 = pneg %p358
      // Predicated region
      $region9: #{simple_cnn_forward.1} parent=5 // pred_check
        _
      $region10: #{simple_cnn_forward.1} parent=5 // pred_check_branch
        %361 = sbr.rel (%p358) target = $region12
      $region11: #{simple_cnn_forward.1} parent=5 // pred_region
        %s362 = ssub.s32 %s23, 1
        // Predicated region
        $region13: #{simple_cnn_forward.1} parent=11 // pred_check
          %p363 = pneg %p70
        $region14: #{simple_cnn_forward.1} parent=11 // pred_check_branch
          %365 = sbr.rel (%p363) target = $region16
        $region15: #{simple_cnn_forward.1} parent=11 // pred_region
          _
        $region16: #{simple_cnn_forward.1} parent=11 // pred_fallthru
          _
        // Predicated region
        $region17: #{simple_cnn_forward.1} parent=11 // pred_check
          %p366 = pneg %p91
        $region18: #{simple_cnn_forward.1} parent=11 // pred_check_branch
          %368 = sbr.rel (%p366) target = $region20
        $region19: #{simple_cnn_forward.1} parent=11 // pred_region
          _
        $region20: #{simple_cnn_forward.1} parent=11 // pred_fallthru
          _
        // Predicated region
        $region21: #{simple_cnn_forward.1} parent=11 // pred_check
          %p369 = pneg %p112
        $region22: #{simple_cnn_forward.1} parent=11 // pred_check_branch
          %371 = sbr.rel (%p369) target = $region24
        $region23: #{simple_cnn_forward.1} parent=11 // pred_region
          _
        $region24: #{simple_cnn_forward.1} parent=11 // pred_fallthru
          _
        // Predicated region
        $region25: #{simple_cnn_forward.1} parent=11 // pred_check
          %p372 = pneg %p133
        $region26: #{simple_cnn_forward.1} parent=11 // pred_check_branch
          %374 = sbr.rel (%p372) target = $region28
        $region27: #{simple_cnn_forward.1} parent=11 // pred_region
          _
        $region28: #{simple_cnn_forward.1} parent=11 // pred_fallthru
          _
        // Predicated region
        $region29: #{simple_cnn_forward.1} parent=11 // pred_check
          %p375 = pneg %p154
        $region30: #{simple_cnn_forward.1} parent=11 // pred_check_branch
          %377 = sbr.rel (%p375) target = $region32
        $region31: #{simple_cnn_forward.1} parent=11 // pred_region
          _
        $region32: #{simple_cnn_forward.1} parent=11 // pred_fallthru
          _
        // Predicated region
        $region33: #{simple_cnn_forward.1} parent=11 // pred_check
          %p378 = pneg %p175
        $region34: #{simple_cnn_forward.1} parent=11 // pred_check_branch
          %380 = sbr.rel (%p378) target = $region36
        $region35: #{simple_cnn_forward.1} parent=11 // pred_region
          _
        $region36: #{simple_cnn_forward.1} parent=11 // pred_fallthru
          _
        // Predicated region
        $region37: #{simple_cnn_forward.1} parent=11 // pred_check
          %p381 = pneg %p196
        $region38: #{simple_cnn_forward.1} parent=11 // pred_check_branch
          %383 = sbr.rel (%p381) target = $region40
        $region39: #{simple_cnn_forward.1} parent=11 // pred_region
          _
        $region40: #{simple_cnn_forward.1} parent=11 // pred_fallthru
          _
        // Predicated region
        $region41: #{simple_cnn_forward.1} parent=11 // pred_check
          %p384 = pneg %p217
        $region42: #{simple_cnn_forward.1} parent=11 // pred_check_branch
          %386 = sbr.rel (%p384) target = $region44
        $region43: #{simple_cnn_forward.1} parent=11 // pred_region
          _
        $region44: #{simple_cnn_forward.1} parent=11 // pred_fallthru
          _
        // Predicated region
        $region45: #{simple_cnn_forward.1} parent=11 // pred_check
          %p387 = pneg %p238
        $region46: #{simple_cnn_forward.1} parent=11 // pred_check_branch
          %389 = sbr.rel (%p387) target = $region48
        $region47: #{simple_cnn_forward.1} parent=11 // pred_region
          _
        $region48: #{simple_cnn_forward.1} parent=11 // pred_fallthru
          _
        // Predicated region
        $region49: #{simple_cnn_forward.1} parent=11 // pred_check
          %p390 = pneg %p259
        $region50: #{simple_cnn_forward.1} parent=11 // pred_check_branch
          %392 = sbr.rel (%p390) target = $region52
        $region51: #{simple_cnn_forward.1} parent=11 // pred_region
          _
        $region52: #{simple_cnn_forward.1} parent=11 // pred_fallthru
          _
        // Predicated region
        $region53: #{simple_cnn_forward.1} parent=11 // pred_check
          %p393 = pneg %p280
        $region54: #{simple_cnn_forward.1} parent=11 // pred_check_branch
          %395 = sbr.rel (%p393) target = $region56
        $region55: #{simple_cnn_forward.1} parent=11 // pred_region
          _
        $region56: #{simple_cnn_forward.1} parent=11 // pred_fallthru
          _
        // Predicated region
        $region57: #{simple_cnn_forward.1} parent=11 // pred_check
          %p396 = pneg %p301
        $region58: #{simple_cnn_forward.1} parent=11 // pred_check_branch
          %398 = sbr.rel (%p396) target = $region60
        $region59: #{simple_cnn_forward.1} parent=11 // pred_region
          _
        $region60: #{simple_cnn_forward.1} parent=11 // pred_fallthru
          _
        // Predicated region
        $region61: #{simple_cnn_forward.1} parent=11 // pred_check
          %p399 = pneg %p322
        $region62: #{simple_cnn_forward.1} parent=11 // pred_check_branch
          %401 = sbr.rel (%p399) target = $region64
        $region63: #{simple_cnn_forward.1} parent=11 // pred_region
          _
        $region64: #{simple_cnn_forward.1} parent=11 // pred_fallthru
          _
      $region12: #{simple_cnn_forward.1} parent=5 // pred_fallthru
        _
      %p402 = scmp.lt.s32.totalorder %s23, 2
      // Predicated region
      $region65: #{simple_cnn_forward.1} parent=5 // pred_check
        %p403 = pneg %p402
      $region66: #{simple_cnn_forward.1} parent=5 // pred_check_branch
        %405 = sbr.rel (%p403) target = $region68
      $region67: #{simple_cnn_forward.1} parent=5 // pred_region
        // Predicated region
        $region69: #{simple_cnn_forward.1} parent=67 // pred_check
          %p406 = pneg %p43
        $region70: #{simple_cnn_forward.1} parent=67 // pred_check_branch
          %408 = sbr.rel (%p406) target = $region72
        $region71: #{simple_cnn_forward.1} parent=67 // pred_region
          %p409 = scmp.lt.s32.totalorder %s23, 1
          %s410 = scalar_select %p409, %s23, 1
          %s411 = smul.addr %s410, 32
          %s412 = smul.addr %s411, 4
          %s413 = scalar_lea.vmem %s0, %s412
        $region72: #{simple_cnn_forward.1} parent=67 // pred_fallthru
          _
      $region68: #{simple_cnn_forward.1} parent=5 // pred_fallthru
        _
      %p414 = scmp.le.s32.totalorder 1, %s23
      %p415 = scmp.lt.s32.totalorder %s23, 3
      %p416 = pnand %p414, %p415
      %p417 = pneg %p416
      // Predicated region
      $region73: #{simple_cnn_forward.1} parent=5 // pred_check
        _
      $region74: #{simple_cnn_forward.1} parent=5 // pred_check_branch
        %419 = sbr.rel (%p416) target = $region76
      $region75: #{simple_cnn_forward.1} parent=5 // pred_region
        %s420 = ssub.s32 %s23, 1
        %p421 = scmp.lt.s32.totalorder %s28, 1
        %s422 = scalar_select %p421, %s28, 1
        %s423 = smul.addr %s422, 32
        %s424 = smul.addr %s423, 4
        %s425 = scalar_lea.vmem %s0, %s424
        %p426 = pneg %p49
        %p427 = pneg %p46
        %p428 = pneg %p70
        %p429 = pneg %p67
        %p430 = pneg %p91
        %p431 = pneg %p88
        %p432 = pneg %p112
        %p433 = pneg %p109
        %p434 = pneg %p133
        %p435 = pneg %p130
        %p436 = pneg %p154
        %p437 = pneg %p151
        %p438 = pneg %p175
        %p439 = pneg %p172
        %p440 = pneg %p196
        %p441 = pneg %p193
        %p442 = pneg %p217
        %p443 = pneg %p214
        %p444 = pneg %p238
        %p445 = pneg %p235
        %p446 = pneg %p259
        %p447 = pneg %p256
        %p448 = pneg %p280
        %p449 = pneg %p277
        %p450 = pneg %p301
        %p451 = pneg %p298
        %p452 = pneg %p322
        %p453 = pneg %p319
        %p454 = pneg %p348
        %p455 = pneg %p345
        %s456 = sand.u32 %s335, 1
        %s457 = scalar_lea.sflag [#allocation3], %s456
        %s458 = sand.u32 %s335, 1
        %s459 = scalar_lea.vmem [#allocation2], %s458
        %p460 = scmp.lt.s32.totalorder %s28, 1
        %s461 = scalar_select %p460, %s28, 1
        %s462 = smul.addr %s461, 32
        %s463 = smul.addr %s462, 4
        %s464 = scalar_lea.vmem %s0, %s463
        %v466 = vld [vmem:[%s464] sm:$0xf]
        %v467 = vld [vmem:[%s464 + $0x4] sm:$0xf]
        %v468 = vld [vmem:[%s464 + $0x8] sm:$0xf]
        %v469 = vld [vmem:[%s464 + $0xc] sm:$0xf]
        %v470 = vld [vmem:[%s464 + $0x10] sm:$0xf]
        %v471 = vld [vmem:[%s464 + $0x14] sm:$0xf]
        %v472 = vld [vmem:[%s464 + $0x18] sm:$0xf]
        %v473 = vld [vmem:[%s464 + $0x1c] sm:$0xf]
        %v474 = vld [vmem:[%s464 + $0x20] sm:$0xf]
        %v475 = vld [vmem:[%s464 + $0x24] sm:$0xf]
        %v476 = vld [vmem:[%s464 + $0x28] sm:$0xf]
        %v477 = vld [vmem:[%s464 + $0x2c] sm:$0xf]
        %v478 = vld [vmem:[%s464 + $0x30] sm:$0xf]
        %v479 = vld [vmem:[%s464 + $0x34] sm:$0xf]
        %v480 = vld [vmem:[%s464 + $0x38] sm:$0xf]
        %v481 = vld [vmem:[%s464 + $0x3c] sm:$0xf]
        %v482 = vld [vmem:[%s464 + $0x40] sm:$0xf]
        %v483 = vld [vmem:[%s464 + $0x44] sm:$0xf]
        %v484 = vld [vmem:[%s464 + $0x48] sm:$0xf]
        %v485 = vld [vmem:[%s464 + $0x4c] sm:$0xf]
        %v486 = vld [vmem:[%s464 + $0x50] sm:$0xf]
        %v487 = vld [vmem:[%s464 + $0x54] sm:$0xf]
        %v488 = vld [vmem:[%s464 + $0x58] sm:$0xf]
        %v489 = vld [vmem:[%s464 + $0x5c] sm:$0xf]
        %v490 = vld [vmem:[%s464 + $0x60] sm:$0xf]
        %v491 = vld [vmem:[%s464 + $0x64] sm:$0xf]
        %v492 = vld [vmem:[%s464 + $0x68] sm:$0xf]
        %v493 = vld [vmem:[%s464 + $0x6c] sm:$0xf]
        %v494 = vld [vmem:[%s464 + $0x70] sm:$0xf]
        %v495 = vld [vmem:[%s464 + $0x74] sm:$0xf]
        %v496 = vld [vmem:[%s464 + $0x78] sm:$0xf]
        %v497 = vld [vmem:[%s464 + $0x7c] sm:$0xf]
        %v498 = vld [vmem:[%s1] sm:$0xf]
        %v499 = vld [vmem:[%s1 + $0x4] sm:$0xf]
        %v500 = vld [vmem:[%s1 + $0x8] sm:$0xf]
        %v501 = vld [vmem:[%s1 + $0xc] sm:$0x3]
        %v502 = vld [vmem:[%s2] sm:$0x1]
        %v504 = vlaneseq
        %v505 = vshrl.u32 %v504, 7
        %v506 = vsub.s32 0, %v505
        %v507 = vrot.slane %v502, %v506
        %v541 = vunpack.c.l.b16 %v466
        %v542 = vunpack.c.l.b16 %v467
        %v543 = vunpack.c.l.b16 %v468
        %v544 = vunpack.c.l.b16 %v469
        %v545 = vunpack.c.l.b16 %v470
        %v546 = vunpack.c.l.b16 %v471
        %v547 = vunpack.c.l.b16 %v472
        %v548 = vunpack.c.l.b16 %v473
        %v549 = vunpack.c.l.b16 %v474
        %v550 = vunpack.c.l.b16 %v475
        %v551 = vunpack.c.l.b16 %v476
        %v552 = vunpack.c.l.b16 %v477
        %v553 = vunpack.c.l.b16 %v478
        %v554 = vunpack.c.l.b16 %v479
        %v555 = vunpack.c.l.b16 %v480
        %v556 = vunpack.c.l.b16 %v481
        %v557 = vunpack.c.l.b16 %v482
        %v558 = vunpack.c.l.b16 %v483
        %v559 = vunpack.c.l.b16 %v484
        %v560 = vunpack.c.l.b16 %v485
        %v561 = vunpack.c.l.b16 %v486
        %v562 = vunpack.c.l.b16 %v487
        %v563 = vunpack.c.l.b16 %v488
        %v564 = vunpack.c.l.b16 %v489
        %v565 = vunpack.c.l.b16 %v490
        %v566 = vunpack.c.l.b16 %v491
        %v567 = vunpack.c.l.b16 %v492
        %v568 = vunpack.c.l.b16 %v493
        %v569 = vunpack.c.l.b16 %v494
        %v570 = vunpack.c.l.b16 %v495
        %v571 = vunpack.c.l.b16 %v496
        %v572 = vunpack.c.l.b16 %v497
        %v573 = vpack.c.b16 %v542, %v541
        %v574 = vpack.c.b16 %v544, %v543
        %v575 = vpack.c.b16 %v546, %v545
        %v576 = vpack.c.b16 %v548, %v547
        %v577 = vpack.c.b16 %v550, %v549
        %v578 = vpack.c.b16 %v552, %v551
        %v579 = vpack.c.b16 %v554, %v553
        %v580 = vpack.c.b16 %v556, %v555
        %v581 = vpack.c.b16 %v558, %v557
        %v582 = vpack.c.b16 %v560, %v559
        %v583 = vpack.c.b16 %v562, %v561
        %v584 = vpack.c.b16 %v564, %v563
        %v585 = vpack.c.b16 %v566, %v565
        %v586 = vpack.c.b16 %v568, %v567
        %v587 = vpack.c.b16 %v570, %v569
        %v588 = vpack.c.b16 %v572, %v571
        %v593 = vunpack.c.l.b16 %v498
        %v594 = vunpack.c.l.b16 %v499
        %v595 = vunpack.c.l.b16 %v500
        %v596 = vunpack.c.l.b16 %v501
        %v597 = vpack.c.b16 %v594, %v593
        %v598 = vpack.c.b16 %v596, %v595
        %vm600 = vcmask 220160
        %v602 = vsel %vm600, %v573, 0
        %v605 = vsel %vm600, %v574, 0
        %v608 = vsel %vm600, %v575, 0
        %v611 = vsel %vm600, %v576, 0
        %v614 = vsel %vm600, %v577, 0
        %v617 = vsel %vm600, %v578, 0
        %v620 = vsel %vm600, %v579, 0
        %v623 = vsel %vm600, %v580, 0
        %v626 = vsel %vm600, %v581, 0
        %v629 = vsel %vm600, %v582, 0
        %v632 = vsel %vm600, %v583, 0
        %v635 = vsel %vm600, %v584, 0
        %v638 = vsel %vm600, %v585, 0
        %v641 = vsel %vm600, %v586, 0
        %v644 = vsel %vm600, %v587, 0
        %v647 = vsel %vm600, %v588, 0
        %vm649 = vcmask 1044480
        %vm650 = vcmask 1045504
        %v651 = vsel %vm649, 4294967295, 65535
        %v652 = vsel %vm650, %v651, 0
        %v654 = vand.u32 %v598, %v652
        %656 = vmatprep.subr.bf16.mxu0 0
        %657 = vmatpush1.bf16.msra.mxu0 %v597
        %658 = vmatprep.subr.bf16.mxu0 0
        %659 = vmatpush1.bf16.msra.mxu0 %v654
        %660 = vmatprep.subr.bf16.mxu0 0
        %661 = vmatpush1.bf16.msra.mxu0 0
        %662 = vmatprep.subr.bf16.mxu0 0
        %663 = vmatpush1.bf16.msra.mxu0 0
        %664 = vmatprep.subr.bf16.mxu0 0
        %665 = vmatpush1.bf16.msra.mxu0 0
        %666 = vmatprep.subr.bf16.mxu0 0
        %667 = vmatpush1.bf16.msra.mxu0 0
        %668 = vmatprep.subr.bf16.mxu0 0
        %669 = vmatpush1.bf16.msra.mxu0 0
        %670 = vmatprep.subr.bf16.mxu0 0
        %671 = vmatpush1.bf16.msra.mxu0 0
        %672 = vmatprep.subr.bf16.mxu0 0
        %673 = vmatpush1.bf16.msra.mxu0 0
        %674 = vmatprep.subr.bf16.mxu0 0
        %675 = vmatpush1.bf16.msra.mxu0 0
        %676 = vmatprep.subr.bf16.mxu0 0
        %677 = vmatpush1.bf16.msra.mxu0 0
        %678 = vmatprep.subr.bf16.mxu0 0
        %679 = vmatpush1.bf16.msra.mxu0 0
        %680 = vmatprep.subr.bf16.mxu0 0
        %681 = vmatpush1.bf16.msra.mxu0 0
        %682 = vmatprep.subr.bf16.mxu0 0
        %683 = vmatpush1.bf16.msra.mxu0 0
        %684 = vmatprep.subr.bf16.mxu0 0
        %685 = vmatpush1.bf16.msra.mxu0 0
        %686 = vmatprep.subr.bf16.mxu0 0
        %687 = vmatpush1.bf16.msra.mxu0 0
        %688 = vmatprep.mubr.bf16.mxu0 0
        %689 = vmatmul.mubr.bf16.gmra.mrb[0].mxu0 %v602
        %v690 = vpop.f32.mrb[0].mxu0
        %v691 = vadd.f32 %v507, %v690
        %v692 = vpop.f32.mrb[0].mxu0
        %v693 = vpop.f32.mrb[0].mxu0
        %v694 = vadd.f32 %v507, %v693
        %v695 = vpop.f32.mrb[0].mxu0
        %696 = vmatprep.mubr.bf16.mxu0 0
        %697 = vmatmul.mubr.bf16.gmra.mrb[0].mxu0 %v605
        %v698 = vpop.f32.mrb[0].mxu0
        %v699 = vadd.f32 %v507, %v698
        %v700 = vpop.f32.mrb[0].mxu0
        %v701 = vpop.f32.mrb[0].mxu0
        %v702 = vadd.f32 %v507, %v701
        %v703 = vpop.f32.mrb[0].mxu0
        %704 = vmatprep.mubr.bf16.mxu0 0
        %705 = vmatmul.mubr.bf16.gmra.mrb[0].mxu0 %v608
        %v706 = vpop.f32.mrb[0].mxu0
        %v707 = vadd.f32 %v507, %v706
        %v708 = vpop.f32.mrb[0].mxu0
        %v709 = vpop.f32.mrb[0].mxu0
        %v710 = vadd.f32 %v507, %v709
        %v711 = vpop.f32.mrb[0].mxu0
        %712 = vmatprep.mubr.bf16.mxu0 0
        %713 = vmatmul.mubr.bf16.gmra.mrb[0].mxu0 %v611
        %v714 = vpop.f32.mrb[0].mxu0
        %v715 = vadd.f32 %v507, %v714
        %v716 = vpop.f32.mrb[0].mxu0
        %v717 = vpop.f32.mrb[0].mxu0
        %v718 = vadd.f32 %v507, %v717
        %v719 = vpop.f32.mrb[0].mxu0
        %720 = vmatprep.mubr.bf16.mxu0 0
        %721 = vmatmul.mubr.bf16.gmra.mrb[0].mxu0 %v614
        %v722 = vpop.f32.mrb[0].mxu0
        %v723 = vadd.f32 %v507, %v722
        %v724 = vpop.f32.mrb[0].mxu0
        %v725 = vpop.f32.mrb[0].mxu0
        %v726 = vadd.f32 %v507, %v725
        %v727 = vpop.f32.mrb[0].mxu0
        %728 = vmatprep.mubr.bf16.mxu0 0
        %729 = vmatmul.mubr.bf16.gmra.mrb[0].mxu0 %v617
        %v730 = vpop.f32.mrb[0].mxu0
        %v731 = vadd.f32 %v507, %v730
        %v732 = vpop.f32.mrb[0].mxu0
        %v733 = vpop.f32.mrb[0].mxu0
        %v734 = vadd.f32 %v507, %v733
        %v735 = vpop.f32.mrb[0].mxu0
        %736 = vmatprep.mubr.bf16.mxu0 0
        %737 = vmatmul.mubr.bf16.gmra.mrb[0].mxu0 %v620
        %v738 = vpop.f32.mrb[0].mxu0
        %v739 = vadd.f32 %v507, %v738
        %v740 = vpop.f32.mrb[0].mxu0
        %v741 = vpop.f32.mrb[0].mxu0
        %v742 = vadd.f32 %v507, %v741
        %v743 = vpop.f32.mrb[0].mxu0
        %744 = vmatprep.mubr.bf16.mxu0 0
        %745 = vmatmul.mubr.bf16.gmra.mrb[0].mxu0 %v623
        %v746 = vpop.f32.mrb[0].mxu0
        %v747 = vadd.f32 %v507, %v746
        %v748 = vpop.f32.mrb[0].mxu0
        %v749 = vpop.f32.mrb[0].mxu0
        %v750 = vadd.f32 %v507, %v749
        %v751 = vpop.f32.mrb[0].mxu0
        %752 = vmatprep.mubr.bf16.mxu0 0
        %753 = vmatmul.mubr.bf16.gmra.mrb[0].mxu0 %v626
        %v754 = vpop.f32.mrb[0].mxu0
        %v755 = vadd.f32 %v507, %v754
        %v756 = vpop.f32.mrb[0].mxu0
        %v757 = vpop.f32.mrb[0].mxu0
        %v758 = vadd.f32 %v507, %v757
        %v759 = vpop.f32.mrb[0].mxu0
        %760 = vmatprep.mubr.bf16.mxu0 0
        %761 = vmatmul.mubr.bf16.gmra.mrb[0].mxu0 %v629
        %v762 = vpop.f32.mrb[0].mxu0
        %v763 = vadd.f32 %v507, %v762
        %v764 = vpop.f32.mrb[0].mxu0
        %v765 = vpop.f32.mrb[0].mxu0
        %v766 = vadd.f32 %v507, %v765
        %v767 = vpop.f32.mrb[0].mxu0
        %768 = vmatprep.mubr.bf16.mxu0 0
        %769 = vmatmul.mubr.bf16.gmra.mrb[0].mxu0 %v632
        %v770 = vpop.f32.mrb[0].mxu0
        %v771 = vadd.f32 %v507, %v770
        %v772 = vpop.f32.mrb[0].mxu0
        %v773 = vpop.f32.mrb[0].mxu0
        %v774 = vadd.f32 %v507, %v773
        %v775 = vpop.f32.mrb[0].mxu0
        %776 = vmatprep.mubr.bf16.mxu0 0
        %777 = vmatmul.mubr.bf16.gmra.mrb[0].mxu0 %v635
        %v778 = vpop.f32.mrb[0].mxu0
        %v779 = vadd.f32 %v507, %v778
        %v780 = vpop.f32.mrb[0].mxu0
        %v781 = vpop.f32.mrb[0].mxu0
        %v782 = vadd.f32 %v507, %v781
        %v783 = vpop.f32.mrb[0].mxu0
        %784 = vmatprep.mubr.bf16.mxu0 0
        %785 = vmatmul.mubr.bf16.gmra.mrb[0].mxu0 %v638
        %v786 = vpop.f32.mrb[0].mxu0
        %v787 = vadd.f32 %v507, %v786
        %v788 = vpop.f32.mrb[0].mxu0
        %v789 = vpop.f32.mrb[0].mxu0
        %v790 = vadd.f32 %v507, %v789
        %v791 = vpop.f32.mrb[0].mxu0
        %792 = vmatprep.mubr.bf16.mxu0 0
        %793 = vmatmul.mubr.bf16.gmra.mrb[0].mxu0 %v641
        %v794 = vpop.f32.mrb[0].mxu0
        %v795 = vadd.f32 %v507, %v794
        %v796 = vpop.f32.mrb[0].mxu0
        %v797 = vpop.f32.mrb[0].mxu0
        %v798 = vadd.f32 %v507, %v797
        %v799 = vpop.f32.mrb[0].mxu0
        %800 = vmatprep.mubr.bf16.mxu0 0
        %801 = vmatmul.mubr.bf16.gmra.mrb[0].mxu0 %v644
        %v802 = vpop.f32.mrb[0].mxu0
        %v803 = vadd.f32 %v507, %v802
        %v804 = vpop.f32.mrb[0].mxu0
        %v805 = vpop.f32.mrb[0].mxu0
        %v806 = vadd.f32 %v507, %v805
        %v807 = vpop.f32.mrb[0].mxu0
        %808 = vmatprep.mubr.bf16.mxu0 0
        %809 = vmatmul.mubr.bf16.gmra.mrb[0].mxu0 %v647
        %v810 = vpop.f32.mrb[0].mxu0
        %v811 = vadd.f32 %v507, %v810
        %v812 = vpop.f32.mrb[0].mxu0
        %v813 = vpop.f32.mrb[0].mxu0
        %v814 = vadd.f32 %v507, %v813
        %v815 = vpop.f32.mrb[0].mxu0
        %816 = vdwg.mxu0
        %v817 = vmax.f32 %v691, 0.0
        %v818 = vmax.f32 %v694, 0.0
        %v819 = vmax.f32 %v699, 0.0
        %v820 = vmax.f32 %v702, 0.0
        %v821 = vmax.f32 %v707, 0.0
        %v822 = vmax.f32 %v710, 0.0
        %v823 = vmax.f32 %v715, 0.0
        %v824 = vmax.f32 %v718, 0.0
        %v825 = vmax.f32 %v723, 0.0
        %v826 = vmax.f32 %v726, 0.0
        %v827 = vmax.f32 %v731, 0.0
        %v828 = vmax.f32 %v734, 0.0
        %v829 = vmax.f32 %v739, 0.0
        %v830 = vmax.f32 %v742, 0.0
        %v831 = vmax.f32 %v747, 0.0
        %v832 = vmax.f32 %v750, 0.0
        %v833 = vmax.f32 %v755, 0.0
        %v834 = vmax.f32 %v758, 0.0
        %v835 = vmax.f32 %v763, 0.0
        %v836 = vmax.f32 %v766, 0.0
        %v837 = vmax.f32 %v771, 0.0
        %v838 = vmax.f32 %v774, 0.0
        %v839 = vmax.f32 %v779, 0.0
        %v840 = vmax.f32 %v782, 0.0
        %v841 = vmax.f32 %v787, 0.0
        %v842 = vmax.f32 %v790, 0.0
        %v843 = vmax.f32 %v795, 0.0
        %v844 = vmax.f32 %v798, 0.0
        %v845 = vmax.f32 %v803, 0.0
        %v846 = vmax.f32 %v806, 0.0
        %v847 = vmax.f32 %v811, 0.0
        %v848 = vmax.f32 %v814, 0.0
        %v849 = vmax.f32 %v817, %v819
        %v850 = vmax.f32 %v818, %v820
        %v851 = vmax.f32 %v819, %v821
        %v852 = vmax.f32 %v820, %v822
        %v853 = vmax.f32 %v821, %v823
        %v854 = vmax.f32 %v822, %v824
        %v855 = vmax.f32 %v823, %v825
        %v856 = vmax.f32 %v824, %v826
        %v857 = vmax.f32 %v825, %v827
        %v858 = vmax.f32 %v826, %v828
        %v859 = vmax.f32 %v827, %v829
        %v860 = vmax.f32 %v828, %v830
        %v861 = vmax.f32 %v829, %v831
        %v862 = vmax.f32 %v830, %v832
        %v863 = vmax.f32 %v831, %v833
        %v864 = vmax.f32 %v832, %v834
        %v865 = vmax.f32 %v833, %v835
        %v866 = vmax.f32 %v834, %v836
        %v867 = vmax.f32 %v835, %v837
        %v868 = vmax.f32 %v836, %v838
        %v869 = vmax.f32 %v837, %v839
        %v870 = vmax.f32 %v838, %v840
        %v871 = vmax.f32 %v839, %v841
        %v872 = vmax.f32 %v840, %v842
        %v873 = vmax.f32 %v841, %v843
        %v874 = vmax.f32 %v842, %v844
        %v875 = vmax.f32 %v843, %v845
        %v876 = vmax.f32 %v844, %v846
        %v877 = vmax.f32 %v845, %v847
        %v878 = vmax.f32 %v846, %v848
        %vm909 = vcmask 1046528
        %v910 = vrot.slane %v849, 1
        %v911 = vrot.slane %v850, 1
        %v912 = vsel %vm909, %v910, %v911
        %v913 = vrot.slane %v851, 1
        %v914 = vsel %vm909, %v911, %v913
        %v915 = vrot.slane %v852, 1
        %v916 = vsel %vm909, %v913, %v915
        %v917 = vrot.slane %v853, 1
        %v918 = vsel %vm909, %v915, %v917
        %v919 = vrot.slane %v854, 1
        %v920 = vsel %vm909, %v917, %v919
        %v921 = vrot.slane %v855, 1
        %v922 = vsel %vm909, %v919, %v921
        %v923 = vrot.slane %v856, 1
        %v924 = vsel %vm909, %v921, %v923
        %v925 = vrot.slane %v857, 1
        %v926 = vsel %vm909, %v923, %v925
        %v927 = vrot.slane %v858, 1
        %v928 = vsel %vm909, %v925, %v927
        %v929 = vrot.slane %v859, 1
        %v930 = vsel %vm909, %v927, %v929
        %v931 = vrot.slane %v860, 1
        %v932 = vsel %vm909, %v929, %v931
        %v933 = vrot.slane %v861, 1
        %v934 = vsel %vm909, %v931, %v933
        %v935 = vrot.slane %v862, 1
        %v936 = vsel %vm909, %v933, %v935
        %v937 = vrot.slane %v863, 1
        %v938 = vsel %vm909, %v935, %v937
        %v939 = vrot.slane %v864, 1
        %v940 = vsel %vm909, %v937, %v939
        %v941 = vrot.slane %v865, 1
        %v942 = vsel %vm909, %v939, %v941
        %v943 = vrot.slane %v866, 1
        %v944 = vsel %vm909, %v941, %v943
        %v945 = vrot.slane %v867, 1
        %v946 = vsel %vm909, %v943, %v945
        %v947 = vrot.slane %v868, 1
        %v948 = vsel %vm909, %v945, %v947
        %v949 = vrot.slane %v869, 1
        %v950 = vsel %vm909, %v947, %v949
        %v951 = vrot.slane %v870, 1
        %v952 = vsel %vm909, %v949, %v951
        %v953 = vrot.slane %v871, 1
        %v954 = vsel %vm909, %v951, %v953
        %v955 = vrot.slane %v872, 1
        %v956 = vsel %vm909, %v953, %v955
        %v957 = vrot.slane %v873, 1
        %v958 = vsel %vm909, %v955, %v957
        %v959 = vrot.slane %v874, 1
        %v960 = vsel %vm909, %v957, %v959
        %v961 = vrot.slane %v875, 1
        %v962 = vsel %vm909, %v959, %v961
        %v963 = vrot.slane %v876, 1
        %v964 = vsel %vm909, %v961, %v963
        %v965 = vrot.slane %v877, 1
        %v966 = vsel %vm909, %v963, %v965
        %v967 = vrot.slane %v878, 1
        %v968 = vsel %vm909, %v965, %v967
        %v999 = vmax.f32 %v849, %v912
        %v1000 = vmax.f32 %v850, %v914
        %v1001 = vmax.f32 %v851, %v916
        %v1002 = vmax.f32 %v852, %v918
        %v1003 = vmax.f32 %v853, %v920
        %v1004 = vmax.f32 %v854, %v922
        %v1005 = vmax.f32 %v855, %v924
        %v1006 = vmax.f32 %v856, %v926
        %v1007 = vmax.f32 %v857, %v928
        %v1008 = vmax.f32 %v858, %v930
        %v1009 = vmax.f32 %v859, %v932
        %v1010 = vmax.f32 %v860, %v934
        %v1011 = vmax.f32 %v861, %v936
        %v1012 = vmax.f32 %v862, %v938
        %v1013 = vmax.f32 %v863, %v940
        %v1014 = vmax.f32 %v864, %v942
        %v1015 = vmax.f32 %v865, %v944
        %v1016 = vmax.f32 %v866, %v946
        %v1017 = vmax.f32 %v867, %v948
        %v1018 = vmax.f32 %v868, %v950
        %v1019 = vmax.f32 %v869, %v952
        %v1020 = vmax.f32 %v870, %v954
        %v1021 = vmax.f32 %v871, %v956
        %v1022 = vmax.f32 %v872, %v958
        %v1023 = vmax.f32 %v873, %v960
        %v1024 = vmax.f32 %v874, %v962
        %v1025 = vmax.f32 %v875, %v964
        %v1026 = vmax.f32 %v876, %v966
        %v1027 = vmax.f32 %v877, %v968
        %v1028 = vmax.f32 %v878, %v967
        %v1029 = vpack.c.bf16 %v1000, %v999
        %v1030 = vpack.c.bf16 %v1002, %v1001
        %v1031 = vpack.c.bf16 %v1004, %v1003
        %v1032 = vpack.c.bf16 %v1006, %v1005
        %v1033 = vpack.c.bf16 %v1008, %v1007
        %v1034 = vpack.c.bf16 %v1010, %v1009
        %v1035 = vpack.c.bf16 %v1012, %v1011
        %v1036 = vpack.c.bf16 %v1014, %v1013
        %v1037 = vpack.c.bf16 %v1016, %v1015
        %v1038 = vpack.c.bf16 %v1018, %v1017
        %v1039 = vpack.c.bf16 %v1020, %v1019
        %v1040 = vpack.c.bf16 %v1022, %v1021
        %v1041 = vpack.c.bf16 %v1024, %v1023
        %v1042 = vpack.c.bf16 %v1026, %v1025
        %v1043 = vpack.c.bf16 %v1028, %v1027
        %v1044 = vld [vmem:[%s7] sm:$0xff]
        %v1045 = vld [vmem:[%s7 + $0x8] sm:$0xff]
        %v1046 = vld [vmem:[%s7 + $0x10] sm:$0xff]
        %v1047 = vld [vmem:[%s7 + $0x18] sm:$0xff]
        %v1048 = vld [vmem:[%s7 + $0x20] sm:$0xff]
        %v1049 = vld [vmem:[%s7 + $0x28] sm:$0xff]
        %v1050 = vld [vmem:[%s7 + $0x30] sm:$0xff]
        %v1051 = vld [vmem:[%s7 + $0x38] sm:$0xff]
        %v1052 = vld [vmem:[%s7 + $0x40] sm:$0xff]
        %v1053 = vld [vmem:[%s7 + $0x48] sm:$0xff]
        %v1054 = vld [vmem:[%s7 + $0x50] sm:$0xff]
        %v1055 = vld [vmem:[%s7 + $0x58] sm:$0xff]
        %v1056 = vld [vmem:[%s7 + $0x60] sm:$0xff]
        %v1057 = vld [vmem:[%s7 + $0x68] sm:$0xff]
        %v1058 = vld [vmem:[%s7 + $0x70] sm:$0xff]
        %v1059 = vld [vmem:[%s7 + $0x78] sm:$0xff]
        %v1060 = vld [vmem:[%s7 + $0x80] sm:$0xff]
        %v1061 = vld [vmem:[%s7 + $0x88] sm:$0xff]
        %v1062 = vld [vmem:[%s7 + $0x90] sm:$0xff]
        %v1063 = vld [vmem:[%s7 + $0x98] sm:$0xff]
        %v1084 = vunpack.c.l.b16 %v1044
        %v1085 = vunpack.c.h.b16 %v1044
        %v1086 = vunpack.c.l.b16 %v1045
        %v1087 = vunpack.c.h.b16 %v1045
        %v1088 = vunpack.c.l.b16 %v1046
        %v1089 = vunpack.c.h.b16 %v1046
        %v1090 = vunpack.c.l.b16 %v1047
        %v1091 = vunpack.c.h.b16 %v1047
        %v1092 = vunpack.c.l.b16 %v1048
        %v1093 = vunpack.c.h.b16 %v1048
        %v1094 = vunpack.c.l.b16 %v1049
        %v1095 = vunpack.c.h.b16 %v1049
        %v1096 = vunpack.c.l.b16 %v1050
        %v1097 = vunpack.c.h.b16 %v1050
        %v1098 = vunpack.c.l.b16 %v1051
        %v1099 = vunpack.c.h.b16 %v1051
        %v1100 = vunpack.c.l.b16 %v1052
        %v1101 = vunpack.c.h.b16 %v1052
        %v1102 = vunpack.c.l.b16 %v1053
        %v1103 = vunpack.c.h.b16 %v1053
        %v1104 = vunpack.c.l.b16 %v1054
        %v1105 = vunpack.c.h.b16 %v1054
        %v1106 = vunpack.c.l.b16 %v1055
        %v1107 = vunpack.c.h.b16 %v1055
        %v1108 = vunpack.c.l.b16 %v1056
        %v1109 = vunpack.c.h.b16 %v1056
        %v1110 = vunpack.c.l.b16 %v1057
        %v1111 = vunpack.c.h.b16 %v1057
        %v1112 = vunpack.c.l.b16 %v1058
        %v1113 = vunpack.c.h.b16 %v1058
        %v1114 = vunpack.c.l.b16 %v1059
        %v1115 = vunpack.c.h.b16 %v1059
        %v1116 = vunpack.c.l.b16 %v1060
        %v1117 = vunpack.c.h.b16 %v1060
        %v1118 = vunpack.c.l.b16 %v1061
        %v1119 = vunpack.c.h.b16 %v1061
        %v1120 = vunpack.c.l.b16 %v1062
        %v1121 = vunpack.c.h.b16 %v1062
        %v1122 = vunpack.c.l.b16 %v1063
        %v1123 = vunpack.c.h.b16 %v1063
        %v1124 = vpack.c.b16 %v1086, %v1084
        %v1125 = vpack.c.b16 %v1087, %v1085
        %v1126 = vpack.c.b16 %v1090, %v1088
        %v1127 = vpack.c.b16 %v1091, %v1089
        %v1128 = vpack.c.b16 %v1094, %v1092
        %v1129 = vpack.c.b16 %v1095, %v1093
        %v1130 = vpack.c.b16 %v1098, %v1096
        %v1131 = vpack.c.b16 %v1099, %v1097
        %v1132 = vpack.c.b16 %v1102, %v1100
        %v1133 = vpack.c.b16 %v1103, %v1101
        %v1134 = vpack.c.b16 %v1106, %v1104
        %v1135 = vpack.c.b16 %v1107, %v1105
        %v1136 = vpack.c.b16 %v1110, %v1108
        %v1137 = vpack.c.b16 %v1111, %v1109
        %v1138 = vpack.c.b16 %v1114, %v1112
        %v1139 = vpack.c.b16 %v1115, %v1113
        %v1140 = vpack.c.b16 %v1118, %v1116
        %v1141 = vpack.c.b16 %v1119, %v1117
        %v1142 = vpack.c.b16 %v1122, %v1120
        %v1143 = vpack.c.b16 %v1123, %v1121
        %vm1154 = vcmask 908288
        %v1156 = vsel %vm1154, %v1125, 0
        %v1159 = vsel %vm1154, %v1127, 0
        %v1162 = vsel %vm1154, %v1129, 0
        %v1165 = vsel %vm1154, %v1131, 0
        %v1168 = vsel %vm1154, %v1133, 0
        %v1171 = vsel %vm1154, %v1135, 0
        %v1174 = vsel %vm1154, %v1137, 0
        %v1177 = vsel %vm1154, %v1139, 0
        %v1180 = vsel %vm1154, %v1141, 0
        %v1183 = vsel %vm1154, %v1143, 0
        %vm1185 = vcmask 1047552
        %v1186 = vsel %vm909, 4294967295, 65535
        %v1187 = vsel %vm1185, %v1186, 0
        %v1189 = vand.u32 %v1043, %v1187
        %1191 = vmatprep.subr.bf16.mxu0 0
        %1192 = vmatpush1.bf16.msra.mxu0 %v1029
        %1193 = vmatprep.subr.bf16.mxu0 0
        %1194 = vmatpush1.bf16.msra.mxu0 %v1030
        %1195 = vmatprep.subr.bf16.mxu0 0
        %1196 = vmatpush1.bf16.msra.mxu0 %v1031
        %1197 = vmatprep.subr.bf16.mxu0 0
        %1198 = vmatpush1.bf16.msra.mxu0 %v1032
        %1199 = vmatprep.subr.bf16.mxu0 0
        %1200 = vmatpush1.bf16.msra.mxu0 %v1033
        %1201 = vmatprep.subr.bf16.mxu0 0
        %1202 = vmatpush1.bf16.msra.mxu0 %v1034
        %1203 = vmatprep.subr.bf16.mxu0 0
        %1204 = vmatpush1.bf16.msra.mxu0 %v1035
        %1205 = vmatprep.subr.bf16.mxu0 0
        %1206 = vmatpush1.bf16.msra.mxu0 %v1036
        %1207 = vmatprep.subr.bf16.mxu0 0
        %1208 = vmatpush1.bf16.msra.mxu0 %v1037
        %1209 = vmatprep.subr.bf16.mxu0 0
        %1210 = vmatpush1.bf16.msra.mxu0 %v1038
        %1211 = vmatprep.subr.bf16.mxu0 0
        %1212 = vmatpush1.bf16.msra.mxu0 %v1039
        %1213 = vmatprep.subr.bf16.mxu0 0
        %1214 = vmatpush1.bf16.msra.mxu0 %v1040
        %1215 = vmatprep.subr.bf16.mxu0 0
        %1216 = vmatpush1.bf16.msra.mxu0 %v1041
        %1217 = vmatprep.subr.bf16.mxu0 0
        %1218 = vmatpush1.bf16.msra.mxu0 %v1042
        %1219 = vmatprep.subr.bf16.mxu0 0
        %1220 = vmatpush1.bf16.msra.mxu0 %v1189
        %1221 = vmatprep.subr.bf16.mxu0 0
        %1222 = vmatpush1.bf16.msra.mxu0 0
        %1223 = vmatprep.mubr.bf16.mxu0 %v1156
        %1224 = vmatmul.mubr.bf16.gmra.mrb[0].mxu0 %v1124
        %v1225 = vpop.f32.mrb[0].mxu0
        %v1226 = vadd.f32 0.0, %v1225
        %v1227 = vpop.f32.mrb[0].mxu0
        %v1228 = vpop.f32.mrb[0].mxu0
        %v1229 = vadd.f32 0.0, %v1228
        %v1230 = vpop.f32.mrb[0].mxu0
        %1231 = vmatprep.mubr.bf16.mxu0 %v1159
        %1232 = vmatmul.mubr.bf16.gmra.mrb[0].mxu0 %v1126
        %v1233 = vpop.f32.mrb[0].mxu0
        %v1234 = vadd.f32 0.0, %v1233
        %v1235 = vpop.f32.mrb[0].mxu0
        %v1236 = vpop.f32.mrb[0].mxu0
        %v1237 = vadd.f32 0.0, %v1236
        %v1238 = vpop.f32.mrb[0].mxu0
        %1239 = vmatprep.mubr.bf16.mxu0 %v1162
        %1240 = vmatmul.mubr.bf16.gmra.mrb[0].mxu0 %v1128
        %v1241 = vpop.f32.mrb[0].mxu0
        %v1242 = vadd.f32 0.0, %v1241
        %v1243 = vpop.f32.mrb[0].mxu0
        %v1244 = vpop.f32.mrb[0].mxu0
        %v1245 = vadd.f32 0.0, %v1244
        %v1246 = vpop.f32.mrb[0].mxu0
        %1247 = vmatprep.mubr.bf16.mxu0 %v1165
        %1248 = vmatmul.mubr.bf16.gmra.mrb[0].mxu0 %v1130
        %v1249 = vpop.f32.mrb[0].mxu0
        %v1250 = vadd.f32 0.0, %v1249
        %v1251 = vpop.f32.mrb[0].mxu0
        %v1252 = vpop.f32.mrb[0].mxu0
        %v1253 = vadd.f32 0.0, %v1252
        %v1254 = vpop.f32.mrb[0].mxu0
        %1255 = vmatprep.mubr.bf16.mxu0 %v1168
        %1256 = vmatmul.mubr.bf16.gmra.mrb[0].mxu0 %v1132
        %v1257 = vpop.f32.mrb[0].mxu0
        %v1258 = vadd.f32 0.0, %v1257
        %v1259 = vpop.f32.mrb[0].mxu0
        %v1260 = vpop.f32.mrb[0].mxu0
        %v1261 = vadd.f32 0.0, %v1260
        %v1262 = vpop.f32.mrb[0].mxu0
        %1263 = vmatprep.mubr.bf16.mxu0 %v1171
        %1264 = vmatmul.mubr.bf16.gmra.mrb[0].mxu0 %v1134
        %v1265 = vpop.f32.mrb[0].mxu0
        %v1266 = vadd.f32 0.0, %v1265
        %v1267 = vpop.f32.mrb[0].mxu0
        %v1268 = vpop.f32.mrb[0].mxu0
        %v1269 = vadd.f32 0.0, %v1268
        %v1270 = vpop.f32.mrb[0].mxu0
        %1271 = vmatprep.mubr.bf16.mxu0 %v1174
        %1272 = vmatmul.mubr.bf16.gmra.mrb[0].mxu0 %v1136
        %v1273 = vpop.f32.mrb[0].mxu0
        %v1274 = vadd.f32 0.0, %v1273
        %v1275 = vpop.f32.mrb[0].mxu0
        %v1276 = vpop.f32.mrb[0].mxu0
        %v1277 = vadd.f32 0.0, %v1276
        %v1278 = vpop.f32.mrb[0].mxu0
        %1279 = vmatprep.mubr.bf16.mxu0 %v1177
        %1280 = vmatmul.mubr.bf16.gmra.mrb[0].mxu0 %v1138
        %v1281 = vpop.f32.mrb[0].mxu0
        %v1282 = vadd.f32 0.0, %v1281
        %v1283 = vpop.f32.mrb[0].mxu0
        %v1284 = vpop.f32.mrb[0].mxu0
        %v1285 = vadd.f32 0.0, %v1284
        %v1286 = vpop.f32.mrb[0].mxu0
        %1287 = vmatprep.mubr.bf16.mxu0 %v1180
        %1288 = vmatmul.mubr.bf16.gmra.mrb[0].mxu0 %v1140
        %v1289 = vpop.f32.mrb[0].mxu0
        %v1290 = vadd.f32 0.0, %v1289
        %v1291 = vpop.f32.mrb[0].mxu0
        %v1292 = vpop.f32.mrb[0].mxu0
        %v1293 = vadd.f32 0.0, %v1292
        %v1294 = vpop.f32.mrb[0].mxu0
        %1295 = vmatprep.mubr.bf16.mxu0 %v1183
        %1296 = vmatmul.mubr.bf16.gmra.mrb[0].mxu0 %v1142
        %v1297 = vpop.f32.mrb[0].mxu0
        %v1298 = vadd.f32 0.0, %v1297
        %v1299 = vpop.f32.mrb[0].mxu0
        %v1300 = vpop.f32.mrb[0].mxu0
        %v1301 = vadd.f32 0.0, %v1300
        %v1302 = vpop.f32.mrb[0].mxu0
        %1303 = vdwg.mxu0
        %v1304 = vpack.c.bf16 %v1229, %v1226
        %v1305 = vpack.c.bf16 %v1237, %v1234
        %v1306 = vpack.c.bf16 %v1245, %v1242
        %v1307 = vpack.c.bf16 %v1253, %v1250
        %v1308 = vpack.c.bf16 %v1261, %v1258
        %v1309 = vpack.c.bf16 %v1269, %v1266
        %v1310 = vpack.c.bf16 %v1277, %v1274
        %v1311 = vpack.c.bf16 %v1285, %v1282
        %v1312 = vpack.c.bf16 %v1293, %v1290
        %v1313 = vpack.c.bf16 %v1301, %v1298
        %vm1314 = vsmask.f32 7424
        %v1316 = vshrl.u32 %v1304, 16
        %v1318 = vshll.u32 %v1304, 16
        %v1320 = vrot.slane %v1318, 1
        %v1321 = vor.u32 %v1316, %v1320
        %v1323 = vshll.u32 %v1305, 16
        %v1325 = vrot.slane %v1323, 1
        %v1326 = vsel %vm1314, %v1321, %v1325
        %v1327 = vshrl.u32 %v1305, 16
        %v1329 = vor.u32 %v1327, %v1325
        %v1331 = vshll.u32 %v1306, 16
        %v1333 = vrot.slane %v1331, 1
        %v1334 = vsel %vm1314, %v1329, %v1333
        %v1335 = vshrl.u32 %v1306, 16
        %v1337 = vor.u32 %v1335, %v1333
        %v1339 = vshll.u32 %v1307, 16
        %v1341 = vrot.slane %v1339, 1
        %v1342 = vsel %vm1314, %v1337, %v1341
        %v1343 = vshrl.u32 %v1307, 16
        %v1345 = vor.u32 %v1343, %v1341
        %v1347 = vshll.u32 %v1308, 16
        %v1349 = vrot.slane %v1347, 1
        %v1350 = vsel %vm1314, %v1345, %v1349
        %v1351 = vshrl.u32 %v1308, 16
        %v1353 = vor.u32 %v1351, %v1349
        %v1355 = vshll.u32 %v1309, 16
        %v1357 = vrot.slane %v1355, 1
        %v1358 = vsel %vm1314, %v1353, %v1357
        %v1359 = vshrl.u32 %v1309, 16
        %v1361 = vor.u32 %v1359, %v1357
        %v1363 = vshll.u32 %v1310, 16
        %v1365 = vrot.slane %v1363, 1
        %v1366 = vsel %vm1314, %v1361, %v1365
        %v1367 = vshrl.u32 %v1310, 16
        %v1369 = vor.u32 %v1367, %v1365
        %v1371 = vshll.u32 %v1311, 16
        %v1373 = vrot.slane %v1371, 1
        %v1374 = vsel %vm1314, %v1369, %v1373
        %v1375 = vshrl.u32 %v1311, 16
        %v1377 = vor.u32 %v1375, %v1373
        %1378 = vrot.lane.b32.xlu0 %v1326, 32
        %v1379 = vpop.permute.xlu0 %1378
        %1380 = vrot.lane.b32.xlu0 %v1334, 32
        %v1381 = vpop.permute.xlu0 %1380
        %1382 = vrot.lane.b32.xlu0 %v1342, 32
        %v1383 = vpop.permute.xlu0 %1382
        %1384 = vrot.lane.b32.xlu0 %v1350, 32
        %v1385 = vpop.permute.xlu0 %1384
        %1386 = vrot.lane.b32.xlu0 %v1358, 32
        %v1387 = vpop.permute.xlu0 %1386
        %1388 = vrot.lane.b32.xlu0 %v1366, 32
        %v1389 = vpop.permute.xlu0 %1388
        %1390 = vrot.lane.b32.xlu0 %v1374, 32
        %v1391 = vpop.permute.xlu0 %1390
        %1392 = vrot.lane.b32.xlu0 %v1377, 32
        %v1393 = vpop.permute.xlu0 %1392
        %vm1402 = vcmask 1046528
        %v1403 = vrot.slane %v1304, 1
        %v1404 = vrot.slane %v1305, 1
        %v1405 = vsel %vm1402, %v1403, %v1404
        %v1406 = vrot.slane %v1306, 1
        %v1407 = vsel %vm1402, %v1404, %v1406
        %v1408 = vrot.slane %v1307, 1
        %v1409 = vsel %vm1402, %v1406, %v1408
        %v1410 = vrot.slane %v1308, 1
        %v1411 = vsel %vm1402, %v1408, %v1410
        %v1412 = vrot.slane %v1309, 1
        %v1413 = vsel %vm1402, %v1410, %v1412
        %v1414 = vrot.slane %v1310, 1
        %v1415 = vsel %vm1402, %v1412, %v1414
        %v1416 = vrot.slane %v1311, 1
        %v1417 = vsel %vm1402, %v1414, %v1416
        %1418 = vrot.lane.b32.xlu0 %v1405, 64
        %v1419 = vpop.permute.xlu0 %1418
        %1420 = vrot.lane.b32.xlu0 %v1407, 64
        %v1421 = vpop.permute.xlu0 %1420
        %1422 = vrot.lane.b32.xlu0 %v1409, 64
        %v1423 = vpop.permute.xlu0 %1422
        %1424 = vrot.lane.b32.xlu0 %v1411, 64
        %v1425 = vpop.permute.xlu0 %1424
        %1426 = vrot.lane.b32.xlu0 %v1413, 64
        %v1427 = vpop.permute.xlu0 %1426
        %1428 = vrot.lane.b32.xlu0 %v1415, 64
        %v1429 = vpop.permute.xlu0 %1428
        %1430 = vrot.lane.b32.xlu0 %v1417, 64
        %v1431 = vpop.permute.xlu0 %1430
        %1432 = vrot.lane.b32.xlu0 %v1416, 64
        %v1433 = vpop.permute.xlu0 %1432
        %1435 = vrot.lane.b32.xlu0 %v1305, 96
        %v1436 = vpop.permute.xlu0 %1435
        %1437 = vrot.lane.b32.xlu0 %v1306, 96
        %v1438 = vpop.permute.xlu0 %1437
        %1439 = vrot.lane.b32.xlu0 %v1307, 96
        %v1440 = vpop.permute.xlu0 %1439
        %1441 = vrot.lane.b32.xlu0 %v1308, 96
        %v1442 = vpop.permute.xlu0 %1441
        %1443 = vrot.lane.b32.xlu0 %v1309, 96
        %v1444 = vpop.permute.xlu0 %1443
        %1445 = vrot.lane.b32.xlu0 %v1310, 96
        %v1446 = vpop.permute.xlu0 %1445
        %1447 = vrot.lane.b32.xlu0 %v1311, 96
        %v1448 = vpop.permute.xlu0 %1447
        %1449 = vrot.lane.b32.xlu0 %v1312, 96
        %v1450 = vpop.permute.xlu0 %1449
        %v1452 = vshll.u32 %v1312, 16
        %v1454 = vrot.slane %v1452, 1
        %v1455 = vsel %vm1314, %v1377, %v1454
        %v1456 = vshrl.u32 %v1312, 16
        %v1458 = vor.u32 %v1456, %v1454
        %v1459 = vrot.slane %v1312, 1
        %v1460 = vsel %vm1402, %v1416, %v1459
        %1461 = vrot.lane.b32.xlu0 %v1407, 32
        %v1462 = vpop.permute.xlu0 %1461
        %1463 = vrot.lane.b32.xlu0 %v1409, 32
        %v1464 = vpop.permute.xlu0 %1463
        %1465 = vrot.lane.b32.xlu0 %v1411, 32
        %v1466 = vpop.permute.xlu0 %1465
        %1467 = vrot.lane.b32.xlu0 %v1413, 32
        %v1468 = vpop.permute.xlu0 %1467
        %1469 = vrot.lane.b32.xlu0 %v1415, 32
        %v1470 = vpop.permute.xlu0 %1469
        %1471 = vrot.lane.b32.xlu0 %v1417, 32
        %v1472 = vpop.permute.xlu0 %1471
        %1473 = vrot.lane.b32.xlu0 %v1460, 32
        %v1474 = vpop.permute.xlu0 %1473
        %1475 = vrot.lane.b32.xlu0 %v1459, 32
        %v1476 = vpop.permute.xlu0 %1475
        %1478 = vrot.lane.b32.xlu0 %v1306, 64
        %v1479 = vpop.permute.xlu0 %1478
        %1480 = vrot.lane.b32.xlu0 %v1307, 64
        %v1481 = vpop.permute.xlu0 %1480
        %1482 = vrot.lane.b32.xlu0 %v1308, 64
        %v1483 = vpop.permute.xlu0 %1482
        %1484 = vrot.lane.b32.xlu0 %v1309, 64
        %v1485 = vpop.permute.xlu0 %1484
        %1486 = vrot.lane.b32.xlu0 %v1310, 64
        %v1487 = vpop.permute.xlu0 %1486
        %1488 = vrot.lane.b32.xlu0 %v1311, 64
        %v1489 = vpop.permute.xlu0 %1488
        %1490 = vrot.lane.b32.xlu0 %v1312, 64
        %v1491 = vpop.permute.xlu0 %1490
        %1492 = vrot.lane.b32.xlu0 %v1313, 64
        %v1493 = vpop.permute.xlu0 %1492
        %v1495 = vshll.u32 %v1313, 16
        %v1497 = vrot.slane %v1495, 1
        %v1498 = vsel %vm1314, %v1458, %v1497
        %v1499 = vshrl.u32 %v1313, 16
        %v1501 = vor.u32 %v1499, %v1497
        %1502 = vrot.lane.b32.xlu0 %v1342, 96
        %v1503 = vpop.permute.xlu0 %1502
        %1504 = vrot.lane.b32.xlu0 %v1350, 96
        %v1505 = vpop.permute.xlu0 %1504
        %1506 = vrot.lane.b32.xlu0 %v1358, 96
        %v1507 = vpop.permute.xlu0 %1506
        %1508 = vrot.lane.b32.xlu0 %v1366, 96
        %v1509 = vpop.permute.xlu0 %1508
        %1510 = vrot.lane.b32.xlu0 %v1374, 96
        %v1511 = vpop.permute.xlu0 %1510
        %1512 = vrot.lane.b32.xlu0 %v1455, 96
        %v1513 = vpop.permute.xlu0 %1512
        %1514 = vrot.lane.b32.xlu0 %v1498, 96
        %v1515 = vpop.permute.xlu0 %1514
        %1516 = vrot.lane.b32.xlu0 %v1501, 96
        %v1517 = vpop.permute.xlu0 %1516
        %v1518 = vrot.slane %v1313, 1
        %v1519 = vsel %vm1402, %v1459, %v1518
        %vm1520 = vcmask 261120
        %v1522 = vsel %vm1520, %v1304, %v1379
        %v1524 = vsel %vm1520, %v1305, %v1381
        %v1526 = vsel %vm1520, %v1306, %v1383
        %v1528 = vsel %vm1520, %v1307, %v1385
        %v1530 = vsel %vm1520, %v1308, %v1387
        %v1532 = vsel %vm1520, %v1309, %v1389
        %v1534 = vsel %vm1520, %v1310, %v1391
        %v1536 = vsel %vm1520, %v1311, %v1393
        %vm1537 = vcmask 523264
        %v1539 = vsel %vm1537, %v1522, %v1419
        %v1541 = vsel %vm1537, %v1524, %v1421
        %v1543 = vsel %vm1537, %v1526, %v1423
        %v1545 = vsel %vm1537, %v1528, %v1425
        %v1547 = vsel %vm1537, %v1530, %v1427
        %v1549 = vsel %vm1537, %v1532, %v1429
        %v1551 = vsel %vm1537, %v1534, %v1431
        %v1553 = vsel %vm1537, %v1536, %v1433
        %vm1554 = vcmask 785408
        %v1556 = vsel %vm1554, %v1539, %v1436
        %v1559 = vsel %vm1554, %v1541, %v1438
        %v1562 = vsel %vm1554, %v1543, %v1440
        %v1565 = vsel %vm1554, %v1545, %v1442
        %v1568 = vsel %vm1554, %v1547, %v1444
        %v1571 = vsel %vm1554, %v1549, %v1446
        %v1574 = vsel %vm1554, %v1551, %v1448
        %v1577 = vsel %vm1554, %v1553, %v1450
        %v1581 = vsel %vm1520, %v1334, %v1462
        %v1584 = vsel %vm1520, %v1342, %v1464
        %v1587 = vsel %vm1520, %v1350, %v1466
        %v1590 = vsel %vm1520, %v1358, %v1468
        %v1593 = vsel %vm1520, %v1366, %v1470
        %v1596 = vsel %vm1520, %v1374, %v1472
        %v1599 = vsel %vm1520, %v1455, %v1474
        %v1602 = vsel %vm1520, %v1458, %v1476
        %v1604 = vsel %vm1537, %v1581, %v1479
        %v1606 = vsel %vm1537, %v1584, %v1481
        %v1608 = vsel %vm1537, %v1587, %v1483
        %v1610 = vsel %vm1537, %v1590, %v1485
        %v1612 = vsel %vm1537, %v1593, %v1487
        %v1614 = vsel %vm1537, %v1596, %v1489
        %v1616 = vsel %vm1537, %v1599, %v1491
        %v1618 = vsel %vm1537, %v1602, %v1493
        %v1620 = vsel %vm1554, %v1604, %v1503
        %v1623 = vsel %vm1554, %v1606, %v1505
        %v1626 = vsel %vm1554, %v1608, %v1507
        %v1629 = vsel %vm1554, %v1610, %v1509
        %v1632 = vsel %vm1554, %v1612, %v1511
        %v1635 = vsel %vm1554, %v1614, %v1513
        %v1638 = vsel %vm1554, %v1616, %v1515
        %v1641 = vsel %vm1554, %v1618, %v1517
        %v1643 = vld [vmem:[%s3] sm:$0xf]
        %v1644 = vld [vmem:[%s3 + $0x4] sm:$0xf]
        %v1645 = vld [vmem:[%s3 + $0x8] sm:$0xf]
        %v1646 = vld [vmem:[%s3 + $0xc] sm:$0xf]
        %v1647 = vld [vmem:[%s3 + $0x10] sm:$0xf]
        %v1648 = vld [vmem:[%s3 + $0x14] sm:$0xf]
        %v1649 = vld [vmem:[%s3 + $0x18] sm:$0xf]
        %v1650 = vld [vmem:[%s3 + $0x1c] sm:$0xf]
        %v1651 = vld [vmem:[%s3 + $0x20] sm:$0xf]
        %v1652 = vld [vmem:[%s3 + $0x24] sm:$0xf]
        %v1653 = vld [vmem:[%s3 + $0x28] sm:$0xf]
        %v1654 = vld [vmem:[%s3 + $0x2c] sm:$0xf]
        %v1655 = vld [vmem:[%s3 + $0x30] sm:$0xf]
        %v1656 = vld [vmem:[%s3 + $0x34] sm:$0xf]
        %v1657 = vld [vmem:[%s3 + $0x38] sm:$0xf]
        %v1658 = vld [vmem:[%s3 + $0x3c] sm:$0xf]
        %v1659 = vld [vmem:[%s3 + $0x40] sm:$0xf]
        %v1660 = vld [vmem:[%s3 + $0x44] sm:$0xf]
        %v1661 = vld [vmem:[%s3 + $0x48] sm:$0xf]
        %v1662 = vld [vmem:[%s3 + $0x4c] sm:$0xf]
        %v1663 = vld [vmem:[%s3 + $0x50] sm:$0xf]
        %v1664 = vld [vmem:[%s3 + $0x54] sm:$0xf]
        %v1665 = vld [vmem:[%s3 + $0x58] sm:$0xf]
        %v1666 = vld [vmem:[%s3 + $0x5c] sm:$0xf]
        %v1667 = vld [vmem:[%s3 + $0x60] sm:$0xf]
        %v1668 = vld [vmem:[%s3 + $0x64] sm:$0xf]
        %v1669 = vld [vmem:[%s3 + $0x68] sm:$0xf]
        %v1670 = vld [vmem:[%s3 + $0x6c] sm:$0xf]
        %v1671 = vld [vmem:[%s3 + $0x70] sm:$0xf]
        %v1672 = vld [vmem:[%s3 + $0x74] sm:$0xf]
        %v1673 = vld [vmem:[%s3 + $0x78] sm:$0xf]
        %v1674 = vld [vmem:[%s3 + $0x7c] sm:$0xf]
        %v1675 = vld [vmem:[%s3 + $0x80] sm:$0xf]
        %v1676 = vld [vmem:[%s3 + $0x84] sm:$0xf]
        %v1677 = vld [vmem:[%s3 + $0x88] sm:$0xf]
        %v1678 = vld [vmem:[%s3 + $0x8c] sm:$0xf]
        %v1679 = vld [vmem:[%s4] sm:$0x1]
        %v1681 = vlaneseq
        %v1682 = vshrl.u32 %v1681, 7
        %v1683 = vsub.s32 0, %v1682
        %v1684 = vrot.slane %v1679, %v1683
        %v1722 = vunpack.c.l.b16 %v1643
        %v1723 = vunpack.c.l.b16 %v1644
        %v1724 = vunpack.c.l.b16 %v1645
        %v1725 = vunpack.c.l.b16 %v1646
        %v1726 = vunpack.c.l.b16 %v1647
        %v1727 = vunpack.c.l.b16 %v1648
        %v1728 = vunpack.c.l.b16 %v1649
        %v1729 = vunpack.c.l.b16 %v1650
        %v1730 = vunpack.c.l.b16 %v1651
        %v1731 = vunpack.c.l.b16 %v1652
        %v1732 = vunpack.c.l.b16 %v1653
        %v1733 = vunpack.c.l.b16 %v1654
        %v1734 = vunpack.c.l.b16 %v1655
        %v1735 = vunpack.c.l.b16 %v1656
        %v1736 = vunpack.c.l.b16 %v1657
        %v1737 = vunpack.c.l.b16 %v1658
        %v1738 = vunpack.c.l.b16 %v1659
        %v1739 = vunpack.c.l.b16 %v1660
        %v1740 = vunpack.c.l.b16 %v1661
        %v1741 = vunpack.c.l.b16 %v1662
        %v1742 = vunpack.c.l.b16 %v1663
        %v1743 = vunpack.c.l.b16 %v1664
        %v1744 = vunpack.c.l.b16 %v1665
        %v1745 = vunpack.c.l.b16 %v1666
        %v1746 = vunpack.c.l.b16 %v1667
        %v1747 = vunpack.c.l.b16 %v1668
        %v1748 = vunpack.c.l.b16 %v1669
        %v1749 = vunpack.c.l.b16 %v1670
        %v1750 = vunpack.c.l.b16 %v1671
        %v1751 = vunpack.c.l.b16 %v1672
        %v1752 = vunpack.c.l.b16 %v1673
        %v1753 = vunpack.c.l.b16 %v1674
        %v1754 = vunpack.c.l.b16 %v1675
        %v1755 = vunpack.c.l.b16 %v1676
        %v1756 = vunpack.c.l.b16 %v1677
        %v1757 = vunpack.c.l.b16 %v1678
        %v1758 = vpack.c.b16 %v1723, %v1722
        %v1759 = vpack.c.b16 %v1725, %v1724
        %v1760 = vpack.c.b16 %v1727, %v1726
        %v1761 = vpack.c.b16 %v1729, %v1728
        %v1762 = vpack.c.b16 %v1731, %v1730
        %v1763 = vpack.c.b16 %v1733, %v1732
        %v1764 = vpack.c.b16 %v1735, %v1734
        %v1765 = vpack.c.b16 %v1737, %v1736
        %v1766 = vpack.c.b16 %v1739, %v1738
        %v1767 = vpack.c.b16 %v1741, %v1740
        %v1768 = vpack.c.b16 %v1743, %v1742
        %v1769 = vpack.c.b16 %v1745, %v1744
        %v1770 = vpack.c.b16 %v1747, %v1746
        %v1771 = vpack.c.b16 %v1749, %v1748
        %v1772 = vpack.c.b16 %v1751, %v1750
        %v1773 = vpack.c.b16 %v1753, %v1752
        %v1774 = vpack.c.b16 %v1755, %v1754
        %v1775 = vpack.c.b16 %v1757, %v1756
        %v1795 = vsel %vm1520, %v1409, 0
        %v1798 = vsel %vm1520, %v1411, 0
        %v1801 = vsel %vm1520, %v1413, 0
        %v1804 = vsel %vm1520, %v1415, 0
        %v1807 = vsel %vm1520, %v1417, 0
        %v1810 = vsel %vm1520, %v1460, 0
        %v1813 = vsel %vm1520, %v1519, 0
        %v1816 = vsel %vm1520, %v1518, 0
        %1818 = vmatprep.subr.bf16.mxu0 0
        %1819 = vmatpush1.bf16.msra.mxu0 %v1758
        %1820 = vmatprep.subr.bf16.mxu0 0
        %1821 = vmatpush1.bf16.msra.mxu0 %v1759
        %1822 = vmatprep.subr.bf16.mxu0 0
        %1823 = vmatpush1.bf16.msra.mxu0 %v1760
        %1824 = vmatprep.subr.bf16.mxu0 0
        %1825 = vmatpush1.bf16.msra.mxu0 %v1761
        %1826 = vmatprep.subr.bf16.mxu0 0
        %1827 = vmatpush1.bf16.msra.mxu0 %v1762
        %1828 = vmatprep.subr.bf16.mxu0 0
        %1829 = vmatpush1.bf16.msra.mxu0 %v1763
        %1830 = vmatprep.subr.bf16.mxu0 0
        %1831 = vmatpush1.bf16.msra.mxu0 %v1764
        %1832 = vmatprep.subr.bf16.mxu0 0
        %1833 = vmatpush1.bf16.msra.mxu0 %v1765
        %1834 = vmatprep.subr.bf16.mxu0 0
        %1835 = vmatpush1.bf16.msra.mxu0 %v1766
        %1836 = vmatprep.subr.bf16.mxu0 0
        %1837 = vmatpush1.bf16.msra.mxu0 %v1767
        %1838 = vmatprep.subr.bf16.mxu0 0
        %1839 = vmatpush1.bf16.msra.mxu0 %v1768
        %1840 = vmatprep.subr.bf16.mxu0 0
        %1841 = vmatpush1.bf16.msra.mxu0 %v1769
        %1842 = vmatprep.subr.bf16.mxu0 0
        %1843 = vmatpush1.bf16.msra.mxu0 %v1770
        %1844 = vmatprep.subr.bf16.mxu0 0
        %1845 = vmatpush1.bf16.msra.mxu0 %v1771
        %1846 = vmatprep.subr.bf16.mxu0 0
        %1847 = vmatpush1.bf16.msra.mxu0 %v1772
        %1848 = vmatprep.subr.bf16.mxu0 0
        %1849 = vmatpush1.bf16.msra.mxu0 %v1773
        %1850 = vmatprep.mubr.bf16.mxu0 %v1620
        %1851 = vmatmul.mubr.bf16.gmra.mrb[0].mxu0 %v1556
        %v1852 = vpop.f32.mrb[0].mxu0
        %v1853 = vadd.f32 %v1684, %v1852
        %v1854 = vpop.f32.mrb[0].mxu0
        %v1855 = vpop.f32.mrb[0].mxu0
        %v1856 = vadd.f32 %v1684, %v1855
        %v1857 = vpop.f32.mrb[0].mxu0
        %1858 = vmatprep.mubr.bf16.mxu0 %v1623
        %1859 = vmatmul.mubr.bf16.gmra.mrb[0].mxu0 %v1559
        %v1860 = vpop.f32.mrb[0].mxu0
        %v1861 = vadd.f32 %v1684, %v1860
        %v1862 = vpop.f32.mrb[0].mxu0
        %v1863 = vpop.f32.mrb[0].mxu0
        %v1864 = vadd.f32 %v1684, %v1863
        %v1865 = vpop.f32.mrb[0].mxu0
        %1866 = vmatprep.mubr.bf16.mxu0 %v1626
        %1867 = vmatmul.mubr.bf16.gmra.mrb[0].mxu0 %v1562
        %v1868 = vpop.f32.mrb[0].mxu0
        %v1869 = vadd.f32 %v1684, %v1868
        %v1870 = vpop.f32.mrb[0].mxu0
        %v1871 = vpop.f32.mrb[0].mxu0
        %v1872 = vadd.f32 %v1684, %v1871
        %v1873 = vpop.f32.mrb[0].mxu0
        %1874 = vmatprep.mubr.bf16.mxu0 %v1629
        %1875 = vmatmul.mubr.bf16.gmra.mrb[0].mxu0 %v1565
        %v1876 = vpop.f32.mrb[0].mxu0
        %v1877 = vadd.f32 %v1684, %v1876
        %v1878 = vpop.f32.mrb[0].mxu0
        %v1879 = vpop.f32.mrb[0].mxu0
        %v1880 = vadd.f32 %v1684, %v1879
        %v1881 = vpop.f32.mrb[0].mxu0
        %1882 = vmatprep.mubr.bf16.mxu0 %v1632
        %1883 = vmatmul.mubr.bf16.gmra.mrb[0].mxu0 %v1568
        %v1884 = vpop.f32.mrb[0].mxu0
        %v1885 = vadd.f32 %v1684, %v1884
        %v1886 = vpop.f32.mrb[0].mxu0
        %v1887 = vpop.f32.mrb[0].mxu0
        %v1888 = vadd.f32 %v1684, %v1887
        %v1889 = vpop.f32.mrb[0].mxu0
        %1890 = vmatprep.mubr.bf16.mxu0 %v1635
        %1891 = vmatmul.mubr.bf16.gmra.mrb[0].mxu0 %v1571
        %v1892 = vpop.f32.mrb[0].mxu0
        %v1893 = vadd.f32 %v1684, %v1892
        %v1894 = vpop.f32.mrb[0].mxu0
        %v1895 = vpop.f32.mrb[0].mxu0
        %v1896 = vadd.f32 %v1684, %v1895
        %v1897 = vpop.f32.mrb[0].mxu0
        %1898 = vmatprep.mubr.bf16.mxu0 %v1638
        %1899 = vmatmul.mubr.bf16.gmra.mrb[0].mxu0 %v1574
        %v1900 = vpop.f32.mrb[0].mxu0
        %v1901 = vadd.f32 %v1684, %v1900
        %v1902 = vpop.f32.mrb[0].mxu0
        %v1903 = vpop.f32.mrb[0].mxu0
        %v1904 = vadd.f32 %v1684, %v1903
        %v1905 = vpop.f32.mrb[0].mxu0
        %1906 = vmatprep.mubr.bf16.mxu0 %v1641
        %1907 = vmatmul.mubr.bf16.gmra.mrb[0].mxu0 %v1577
        %v1908 = vpop.f32.mrb[0].mxu0
        %v1909 = vadd.f32 %v1684, %v1908
        %v1910 = vpop.f32.mrb[0].mxu0
        %v1911 = vpop.f32.mrb[0].mxu0
        %v1912 = vadd.f32 %v1684, %v1911
        %v1913 = vpop.f32.mrb[0].mxu0
        %1914 = vdwg.mxu0
        %1915 = vmatprep.subr.bf16.mxu0 0
        %1916 = vmatpush1.bf16.msra.mxu0 %v1774
        %1917 = vmatprep.subr.bf16.mxu0 0
        %1918 = vmatpush1.bf16.msra.mxu0 %v1775
        %1919 = vmatprep.subr.bf16.mxu0 0
        %1920 = vmatpush1.bf16.msra.mxu0 0
        %1921 = vmatprep.subr.bf16.mxu0 0
        %1922 = vmatpush1.bf16.msra.mxu0 0
        %1923 = vmatprep.subr.bf16.mxu0 0
        %1924 = vmatpush1.bf16.msra.mxu0 0
        %1925 = vmatprep.subr.bf16.mxu0 0
        %1926 = vmatpush1.bf16.msra.mxu0 0
        %1927 = vmatprep.subr.bf16.mxu0 0
        %1928 = vmatpush1.bf16.msra.mxu0 0
        %1929 = vmatprep.subr.bf16.mxu0 0
        %1930 = vmatpush1.bf16.msra.mxu0 0
        %1931 = vmatprep.subr.bf16.mxu0 0
        %1932 = vmatpush1.bf16.msra.mxu0 0
        %1933 = vmatprep.subr.bf16.mxu0 0
        %1934 = vmatpush1.bf16.msra.mxu0 0
        %1935 = vmatprep.subr.bf16.mxu0 0
        %1936 = vmatpush1.bf16.msra.mxu0 0
        %1937 = vmatprep.subr.bf16.mxu0 0
        %1938 = vmatpush1.bf16.msra.mxu0 0
        %1939 = vmatprep.subr.bf16.mxu0 0
        %1940 = vmatpush1.bf16.msra.mxu0 0
        %1941 = vmatprep.subr.bf16.mxu0 0
        %1942 = vmatpush1.bf16.msra.mxu0 0
        %1943 = vmatprep.subr.bf16.mxu0 0
        %1944 = vmatpush1.bf16.msra.mxu0 0
        %1945 = vmatprep.subr.bf16.mxu0 0
        %1946 = vmatpush1.bf16.msra.mxu0 0
        %1947 = vmatprep.mubr.bf16.mxu0 0
        %1948 = vmatmul.mubr.bf16.gmra.mrb[0].mxu0 %v1795
        %v1949 = vpop.f32.mrb[0].mxu0
        %v1950 = vadd.f32 %v1853, %v1949
        %v1951 = vpop.f32.mrb[0].mxu0
        %v1952 = vpop.f32.mrb[0].mxu0
        %v1953 = vadd.f32 %v1856, %v1952
        %v1954 = vpop.f32.mrb[0].mxu0
        %1955 = vmatprep.mubr.bf16.mxu0 0
        %1956 = vmatmul.mubr.bf16.gmra.mrb[0].mxu0 %v1798
        %v1957 = vpop.f32.mrb[0].mxu0
        %v1958 = vadd.f32 %v1861, %v1957
        %v1959 = vpop.f32.mrb[0].mxu0
        %v1960 = vpop.f32.mrb[0].mxu0
        %v1961 = vadd.f32 %v1864, %v1960
        %v1962 = vpop.f32.mrb[0].mxu0
        %1963 = vmatprep.mubr.bf16.mxu0 0
        %1964 = vmatmul.mubr.bf16.gmra.mrb[0].mxu0 %v1801
        %v1965 = vpop.f32.mrb[0].mxu0
        %v1966 = vadd.f32 %v1869, %v1965
        %v1967 = vpop.f32.mrb[0].mxu0
        %v1968 = vpop.f32.mrb[0].mxu0
        %v1969 = vadd.f32 %v1872, %v1968
        %v1970 = vpop.f32.mrb[0].mxu0
        %1971 = vmatprep.mubr.bf16.mxu0 0
        %1972 = vmatmul.mubr.bf16.gmra.mrb[0].mxu0 %v1804
        %v1973 = vpop.f32.mrb[0].mxu0
        %v1974 = vadd.f32 %v1877, %v1973
        %v1975 = vpop.f32.mrb[0].mxu0
        %v1976 = vpop.f32.mrb[0].mxu0
        %v1977 = vadd.f32 %v1880, %v1976
        %v1978 = vpop.f32.mrb[0].mxu0
        %1979 = vmatprep.mubr.bf16.mxu0 0
        %1980 = vmatmul.mubr.bf16.gmra.mrb[0].mxu0 %v1807
        %v1981 = vpop.f32.mrb[0].mxu0
        %v1982 = vadd.f32 %v1885, %v1981
        %v1983 = vpop.f32.mrb[0].mxu0
        %v1984 = vpop.f32.mrb[0].mxu0
        %v1985 = vadd.f32 %v1888, %v1984
        %v1986 = vpop.f32.mrb[0].mxu0
        %1987 = vmatprep.mubr.bf16.mxu0 0
        %1988 = vmatmul.mubr.bf16.gmra.mrb[0].mxu0 %v1810
        %v1989 = vpop.f32.mrb[0].mxu0
        %v1990 = vadd.f32 %v1893, %v1989
        %v1991 = vpop.f32.mrb[0].mxu0
        %v1992 = vpop.f32.mrb[0].mxu0
        %v1993 = vadd.f32 %v1896, %v1992
        %v1994 = vpop.f32.mrb[0].mxu0
        %1995 = vmatprep.mubr.bf16.mxu0 0
        %1996 = vmatmul.mubr.bf16.gmra.mrb[0].mxu0 %v1813
        %v1997 = vpop.f32.mrb[0].mxu0
        %v1998 = vadd.f32 %v1901, %v1997
        %v1999 = vpop.f32.mrb[0].mxu0
        %v2000 = vpop.f32.mrb[0].mxu0
        %v2001 = vadd.f32 %v1904, %v2000
        %v2002 = vpop.f32.mrb[0].mxu0
        %2003 = vmatprep.mubr.bf16.mxu0 0
        %2004 = vmatmul.mubr.bf16.gmra.mrb[0].mxu0 %v1816
        %v2005 = vpop.f32.mrb[0].mxu0
        %v2006 = vadd.f32 %v1909, %v2005
        %v2007 = vpop.f32.mrb[0].mxu0
        %v2008 = vpop.f32.mrb[0].mxu0
        %v2009 = vadd.f32 %v1912, %v2008
        %v2010 = vpop.f32.mrb[0].mxu0
        %2011 = vdwg.mxu0
        %v2012 = vmax.f32 %v1950, 0.0
        %v2013 = vmax.f32 %v1953, 0.0
        %v2014 = vmax.f32 %v1958, 0.0
        %v2015 = vmax.f32 %v1961, 0.0
        %v2016 = vmax.f32 %v1966, 0.0
        %v2017 = vmax.f32 %v1969, 0.0
        %v2018 = vmax.f32 %v1974, 0.0
        %v2019 = vmax.f32 %v1977, 0.0
        %v2020 = vmax.f32 %v1982, 0.0
        %v2021 = vmax.f32 %v1985, 0.0
        %v2022 = vmax.f32 %v1990, 0.0
        %v2023 = vmax.f32 %v1993, 0.0
        %v2024 = vmax.f32 %v1998, 0.0
        %v2025 = vmax.f32 %v2001, 0.0
        %v2026 = vmax.f32 %v2006, 0.0
        %v2027 = vmax.f32 %v2009, 0.0
        %v2028 = vmax.f32 %v2012, %v2014
        %v2029 = vmax.f32 %v2013, %v2015
        %v2030 = vmax.f32 %v2014, %v2016
        %v2031 = vmax.f32 %v2015, %v2017
        %v2032 = vmax.f32 %v2016, %v2018
        %v2033 = vmax.f32 %v2017, %v2019
        %v2034 = vmax.f32 %v2018, %v2020
        %v2035 = vmax.f32 %v2019, %v2021
        %v2036 = vmax.f32 %v2020, %v2022
        %v2037 = vmax.f32 %v2021, %v2023
        %v2038 = vmax.f32 %v2022, %v2024
        %v2039 = vmax.f32 %v2023, %v2025
        %v2040 = vmax.f32 %v2024, %v2026
        %v2041 = vmax.f32 %v2025, %v2027
        %v2056 = vrot.slane %v2028, 1
        %v2057 = vrot.slane %v2029, 1
        %v2058 = vsel %vm909, %v2056, %v2057
        %v2059 = vrot.slane %v2030, 1
        %v2060 = vsel %vm909, %v2057, %v2059
        %v2061 = vrot.slane %v2031, 1
        %v2062 = vsel %vm909, %v2059, %v2061
        %v2063 = vrot.slane %v2032, 1
        %v2064 = vsel %vm909, %v2061, %v2063
        %v2065 = vrot.slane %v2033, 1
        %v2066 = vsel %vm909, %v2063, %v2065
        %v2067 = vrot.slane %v2034, 1
        %v2068 = vsel %vm909, %v2065, %v2067
        %v2069 = vrot.slane %v2035, 1
        %v2070 = vsel %vm909, %v2067, %v2069
        %v2071 = vrot.slane %v2036, 1
        %v2072 = vsel %vm909, %v2069, %v2071
        %v2073 = vrot.slane %v2037, 1
        %v2074 = vsel %vm909, %v2071, %v2073
        %v2075 = vrot.slane %v2038, 1
        %v2076 = vsel %vm909, %v2073, %v2075
        %v2077 = vrot.slane %v2039, 1
        %v2078 = vsel %vm909, %v2075, %v2077
        %v2079 = vrot.slane %v2040, 1
        %v2080 = vsel %vm909, %v2077, %v2079
        %v2081 = vrot.slane %v2041, 1
        %v2082 = vsel %vm909, %v2079, %v2081
        %v2097 = vmax.f32 %v2028, %v2058
        %v2098 = vmax.f32 %v2029, %v2060
        %v2099 = vmax.f32 %v2030, %v2062
        %v2100 = vmax.f32 %v2031, %v2064
        %v2101 = vmax.f32 %v2032, %v2066
        %v2102 = vmax.f32 %v2033, %v2068
        %v2103 = vmax.f32 %v2034, %v2070
        %v2104 = vmax.f32 %v2035, %v2072
        %v2105 = vmax.f32 %v2036, %v2074
        %v2106 = vmax.f32 %v2037, %v2076
        %v2107 = vmax.f32 %v2038, %v2078
        %v2108 = vmax.f32 %v2039, %v2080
        %v2109 = vmax.f32 %v2040, %v2082
        %v2110 = vmax.f32 %v2041, %v2081
        %v2111 = vpack.c.bf16 %v2098, %v2097
        %v2112 = vpack.c.bf16 %v2100, %v2099
        %v2113 = vpack.c.bf16 %v2102, %v2101
        %v2114 = vpack.c.bf16 %v2104, %v2103
        %v2115 = vpack.c.bf16 %v2106, %v2105
        %v2116 = vpack.c.bf16 %v2108, %v2107
        %v2117 = vpack.c.bf16 %v2110, %v2109
        %v2118 = vld [vmem:[%s8] sm:$0xf]
        %v2119 = vld [vmem:[%s8 + $0x4] sm:$0xf]
        %v2120 = vld [vmem:[%s8 + $0x8] sm:$0xf]
        %v2121 = vld [vmem:[%s8 + $0xc] sm:$0xf]
        %v2122 = vld [vmem:[%s8 + $0x10] sm:$0xf]
        %v2123 = vld [vmem:[%s8 + $0x14] sm:$0xf]
        %v2130 = vunpack.c.l.b16 %v2118
        %v2131 = vunpack.c.l.b16 %v2119
        %v2132 = vunpack.c.l.b16 %v2120
        %v2133 = vunpack.c.l.b16 %v2121
        %v2134 = vunpack.c.l.b16 %v2122
        %v2135 = vunpack.c.l.b16 %v2123
        %v2136 = vpack.c.b16 %v2131, %v2130
        %v2137 = vpack.c.b16 %v2133, %v2132
        %v2138 = vpack.c.b16 %v2135, %v2134
        %vm2139 = vcmask 842752
        %v2141 = vsel %vm2139, %v2136, 0
        %v2144 = vsel %vm2139, %v2137, 0
        %v2147 = vsel %vm2139, %v2138, 0
        %vm2149 = vcmask 1042432
        %vm2150 = vcmask 1043456
        %v2151 = vsel %vm2149, 4294967295, 65535
        %v2152 = vsel %vm2150, %v2151, 0
        %v2154 = vand.u32 %v2117, %v2152
        %2156 = vmatprep.subr.bf16.mxu0 0
        %2157 = vmatpush1.bf16.msra.mxu0 %v2111
        %2158 = vmatprep.subr.bf16.mxu0 0
        %2159 = vmatpush1.bf16.msra.mxu0 %v2112
        %2160 = vmatprep.subr.bf16.mxu0 0
        %2161 = vmatpush1.bf16.msra.mxu0 %v2113
        %2162 = vmatprep.subr.bf16.mxu0 0
        %2163 = vmatpush1.bf16.msra.mxu0 %v2114
        %2164 = vmatprep.subr.bf16.mxu0 0
        %2165 = vmatpush1.bf16.msra.mxu0 %v2115
        %2166 = vmatprep.subr.bf16.mxu0 0
        %2167 = vmatpush1.bf16.msra.mxu0 %v2116
        %2168 = vmatprep.subr.bf16.mxu0 0
        %2169 = vmatpush1.bf16.msra.mxu0 %v2154
        %2170 = vmatprep.subr.bf16.mxu0 0
        %2171 = vmatpush1.bf16.msra.mxu0 0
        %2172 = vmatprep.subr.bf16.mxu0 0
        %2173 = vmatpush1.bf16.msra.mxu0 0
        %2174 = vmatprep.subr.bf16.mxu0 0
        %2175 = vmatpush1.bf16.msra.mxu0 0
        %2176 = vmatprep.subr.bf16.mxu0 0
        %2177 = vmatpush1.bf16.msra.mxu0 0
        %2178 = vmatprep.subr.bf16.mxu0 0
        %2179 = vmatpush1.bf16.msra.mxu0 0
        %2180 = vmatprep.subr.bf16.mxu0 0
        %2181 = vmatpush1.bf16.msra.mxu0 0
        %2182 = vmatprep.subr.bf16.mxu0 0
        %2183 = vmatpush1.bf16.msra.mxu0 0
        %2184 = vmatprep.subr.bf16.mxu0 0
        %2185 = vmatpush1.bf16.msra.mxu0 0
        %2186 = vmatprep.subr.bf16.mxu0 0
        %2187 = vmatpush1.bf16.msra.mxu0 0
        %2188 = vmatprep.mubr.bf16.mxu0 0
        %2189 = vmatmul.mubr.bf16.gmra.mrb[0].mxu0 %v2141
        %v2190 = vpop.f32.mrb[0].mxu0
        %v2191 = vadd.f32 0.0, %v2190
        %v2192 = vpop.f32.mrb[0].mxu0
        %v2193 = vpop.f32.mrb[0].mxu0
        %v2194 = vadd.f32 0.0, %v2193
        %v2195 = vpop.f32.mrb[0].mxu0
        %2196 = vmatprep.mubr.bf16.mxu0 0
        %2197 = vmatmul.mubr.bf16.gmra.mrb[0].mxu0 %v2144
        %v2198 = vpop.f32.mrb[0].mxu0
        %v2199 = vadd.f32 0.0, %v2198
        %v2200 = vpop.f32.mrb[0].mxu0
        %v2201 = vpop.f32.mrb[0].mxu0
        %v2202 = vadd.f32 0.0, %v2201
        %v2203 = vpop.f32.mrb[0].mxu0
        %2204 = vmatprep.mubr.bf16.mxu0 0
        %2205 = vmatmul.mubr.bf16.gmra.mrb[0].mxu0 %v2147
        %v2206 = vpop.f32.mrb[0].mxu0
        %v2207 = vadd.f32 0.0, %v2206
        %v2208 = vpop.f32.mrb[0].mxu0
        %v2209 = vpop.f32.mrb[0].mxu0
        %v2210 = vadd.f32 0.0, %v2209
        %v2211 = vpop.f32.mrb[0].mxu0
        %2212 = vdwg.mxu0
        %v2213 = vpack.c.bf16 %v2194, %v2191
        %v2214 = vpack.c.bf16 %v2202, %v2199
        %v2215 = vpack.c.bf16 %v2210, %v2207
        %v2217 = vshrl.u32 %v2213, 16
        %v2219 = vshll.u32 %v2213, 16
        %v2221 = vrot.slane %v2219, 1
        %v2222 = vor.u32 %v2217, %v2221
        %v2224 = vshll.u32 %v2214, 16
        %v2226 = vrot.slane %v2224, 1
        %v2227 = vsel %vm1314, %v2222, %v2226
        %v2228 = vshrl.u32 %v2214, 16
        %v2230 = vor.u32 %v2228, %v2226
        %2231 = vrot.lane.b32.xlu0 %v2227, 64
        %v2232 = vpop.permute.xlu0 %2231
        %2233 = vrot.lane.b32.xlu0 %v2230, 64
        %v2234 = vpop.permute.xlu0 %2233
        %v2237 = vrot.slane %v2213, 1
        %v2238 = vrot.slane %v2214, 1
        %v2239 = vsel %vm1402, %v2237, %v2238
        %vm2241 = vcmask 1043456
        %v2242 = vrot.slane %v2213, 4
        %v2243 = vrot.slane %v2214, 4
        %v2244 = vsel %vm2241, %v2242, %v2243
        %v2245 = vrot.slane %v2215, 4
        %v2246 = vsel %vm2241, %v2243, %v2245
        %2247 = vrot.lane.b32.xlu0 %v2244, 64
        %v2248 = vpop.permute.xlu0 %2247
        %2249 = vrot.lane.b32.xlu0 %v2246, 64
        %v2250 = vpop.permute.xlu0 %2249
        %vm2251 = vsmask.f32 3328
        %v2252 = vrot.slane %v2217, 4
        %v2253 = vrot.slane %v2219, 5
        %v2254 = vor.u32 %v2252, %v2253
        %v2255 = vrot.slane %v2228, 4
        %v2256 = vrot.slane %v2224, 5
        %v2257 = vor.u32 %v2255, %v2256
        %v2258 = vsel %vm2251, %v2254, %v2257
        %v2260 = vshrl.u32 %v2215, 16
        %v2262 = vrot.slane %v2260, 4
        %v2263 = vshll.u32 %v2215, 16
        %v2265 = vrot.slane %v2263, 5
        %v2266 = vor.u32 %v2262, %v2265
        %v2267 = vsel %vm2251, %v2257, %v2266
        %vm2268 = vcmask 1042432
        %v2269 = vrot.slane %v2213, 5
        %v2270 = vrot.slane %v2214, 5
        %v2271 = vsel %vm2268, %v2269, %v2270
        %v2272 = vrot.slane %v2215, 5
        %v2273 = vsel %vm2268, %v2270, %v2272
        %2274 = vrot.lane.b32.xlu0 %v2271, 64
        %v2275 = vpop.permute.xlu0 %2274
        %2276 = vrot.lane.b32.xlu0 %v2273, 64
        %v2277 = vpop.permute.xlu0 %2276
        %v2278 = vrot.slane %v2263, 1
        %v2279 = vsel %vm1314, %v2230, %v2278
        %v2280 = vor.u32 %v2260, %v2278
        %2281 = vrot.lane.b32.xlu0 %v2279, 64
        %v2282 = vpop.permute.xlu0 %2281
        %2283 = vrot.lane.b32.xlu0 %v2280, 64
        %v2284 = vpop.permute.xlu0 %2283
        %v2285 = vrot.slane %v2215, 1
        %v2286 = vsel %vm1402, %v2238, %v2285
        %v2288 = vsel %vm1537, %v2213, %v2232
        %v2291 = vsel %vm1537, %v2214, %v2234
        %v2295 = vsel %vm1537, %v2239, %v2248
        %v2299 = vsel %vm1537, %v2238, %v2250
        %v2303 = vsel %vm1537, %v2258, %v2275
        %v2307 = vsel %vm1537, %v2267, %v2277
        %v2310 = vsel %vm1537, %v2214, %v2282
        %v2313 = vsel %vm1537, %v2215, %v2284
        %v2315 = vld [vmem:[%s5] sm:$0xf]
        %v2316 = vld [vmem:[%s5 + $0x4] sm:$0xf]
        %v2317 = vld [vmem:[%s5 + $0x8] sm:$0xf]
        %v2318 = vld [vmem:[%s5 + $0xc] sm:$0xf]
        %v2319 = vld [vmem:[%s5 + $0x10] sm:$0xf]
        %v2320 = vld [vmem:[%s5 + $0x14] sm:$0xf]
        %v2321 = vld [vmem:[%s5 + $0x18] sm:$0xf]
        %v2322 = vld [vmem:[%s5 + $0x1c] sm:$0xf]
        %v2323 = vld [vmem:[%s5 + $0x20] sm:$0xf]
        %v2324 = vld [vmem:[%s5 + $0x24] sm:$0xf]
        %v2325 = vld [vmem:[%s5 + $0x28] sm:$0xf]
        %v2326 = vld [vmem:[%s5 + $0x2c] sm:$0xf]
        %v2327 = vld [vmem:[%s5 + $0x30] sm:$0xf]
        %v2328 = vld [vmem:[%s5 + $0x34] sm:$0xf]
        %v2329 = vld [vmem:[%s5 + $0x38] sm:$0xf]
        %v2330 = vld [vmem:[%s5 + $0x3c] sm:$0xf]
        %v2331 = vld [vmem:[%s5 + $0x40] sm:$0xf]
        %v2332 = vld [vmem:[%s5 + $0x44] sm:$0xf]
        %v2333 = vld [vmem:[%s5 + $0x48] sm:$0xf]
        %v2334 = vld [vmem:[%s5 + $0x4c] sm:$0xf]
        %v2335 = vld [vmem:[%s5 + $0x50] sm:$0xf]
        %v2336 = vld [vmem:[%s5 + $0x54] sm:$0xf]
        %v2337 = vld [vmem:[%s5 + $0x58] sm:$0xf]
        %v2338 = vld [vmem:[%s5 + $0x5c] sm:$0xf]
        %v2339 = vld [vmem:[%s5 + $0x60] sm:$0xf]
        %v2340 = vld [vmem:[%s5 + $0x64] sm:$0xf]
        %v2341 = vld [vmem:[%s5 + $0x68] sm:$0xf]
        %v2342 = vld [vmem:[%s5 + $0x6c] sm:$0xf]
        %v2343 = vld [vmem:[%s5 + $0x70] sm:$0xf]
        %v2344 = vld [vmem:[%s5 + $0x74] sm:$0xf]
        %v2345 = vld [vmem:[%s5 + $0x78] sm:$0xf]
        %v2346 = vld [vmem:[%s5 + $0x7c] sm:$0xf]
        %v2347 = vld [vmem:[%s5 + $0x80] sm:$0xf]
        %v2348 = vld [vmem:[%s5 + $0x84] sm:$0xf]
        %v2349 = vld [vmem:[%s5 + $0x88] sm:$0xf]
        %v2350 = vld [vmem:[%s5 + $0x8c] sm:$0xf]
        %v2351 = vld [vmem:[%s5 + $0x90] sm:$0xf]
        %v2352 = vld [vmem:[%s5 + $0x94] sm:$0xf]
        %v2353 = vld [vmem:[%s5 + $0x98] sm:$0xf]
        %v2354 = vld [vmem:[%s5 + $0x9c] sm:$0xf]
        %v2355 = vld [vmem:[%s5 + $0xa0] sm:$0xf]
        %v2356 = vld [vmem:[%s5 + $0xa4] sm:$0xf]
        %v2357 = vld [vmem:[%s5 + $0xa8] sm:$0xf]
        %v2358 = vld [vmem:[%s5 + $0xac] sm:$0xf]
        %v2359 = vld [vmem:[%s5 + $0xb0] sm:$0xf]
        %v2360 = vld [vmem:[%s5 + $0xb4] sm:$0xf]
        %v2361 = vld [vmem:[%s5 + $0xb8] sm:$0xf]
        %v2362 = vld [vmem:[%s5 + $0xbc] sm:$0xf]
        %v2363 = vld [vmem:[%s5 + $0xc0] sm:$0xf]
        %v2364 = vld [vmem:[%s5 + $0xc4] sm:$0xf]
        %v2365 = vld [vmem:[%s5 + $0xc8] sm:$0xf]
        %v2366 = vld [vmem:[%s5 + $0xcc] sm:$0xf]
        %v2367 = vld [vmem:[%s5 + $0xd0] sm:$0xf]
        %v2368 = vld [vmem:[%s5 + $0xd4] sm:$0xf]
        %v2369 = vld [vmem:[%s5 + $0xd8] sm:$0xf]
        %v2370 = vld [vmem:[%s5 + $0xdc] sm:$0xf]
        %v2371 = vld [vmem:[%s5 + $0xe0] sm:$0xf]
        %v2372 = vld [vmem:[%s5 + $0xe4] sm:$0xf]
        %v2373 = vld [vmem:[%s5 + $0xe8] sm:$0xf]
        %v2374 = vld [vmem:[%s5 + $0xec] sm:$0xf]
        %v2375 = vld [vmem:[%s5 + $0xf0] sm:$0xf]
        %v2376 = vld [vmem:[%s5 + $0xf4] sm:$0xf]
        %v2377 = vld [vmem:[%s5 + $0xf8] sm:$0xf]
        %v2378 = vld [vmem:[%s5 + $0xfc] sm:$0xf]
        %v2379 = vld [vmem:[%s5 + $0x100] sm:$0xf]
        %v2380 = vld [vmem:[%s5 + $0x104] sm:$0xf]
        %v2381 = vld [vmem:[%s5 + $0x108] sm:$0xf]
        %v2382 = vld [vmem:[%s5 + $0x10c] sm:$0xf]
        %v2383 = vld [vmem:[%s5 + $0x110] sm:$0xf]
        %v2384 = vld [vmem:[%s5 + $0x114] sm:$0xf]
        %v2385 = vld [vmem:[%s5 + $0x118] sm:$0xf]
        %v2386 = vld [vmem:[%s5 + $0x11c] sm:$0xf]
        %v2387 = vld [vmem:[%s6] sm:$0x1]
        %v2389 = vlaneseq
        %v2390 = vshrl.u32 %v2389, 7
        %v2391 = vsub.s32 0, %v2390
        %v2392 = vrot.slane %v2387, %v2391
        %v2466 = vunpack.c.l.b16 %v2315
        %v2467 = vunpack.c.l.b16 %v2316
        %v2468 = vunpack.c.l.b16 %v2317
        %v2469 = vunpack.c.l.b16 %v2318
        %v2470 = vunpack.c.l.b16 %v2319
        %v2471 = vunpack.c.l.b16 %v2320
        %v2472 = vunpack.c.l.b16 %v2321
        %v2473 = vunpack.c.l.b16 %v2322
        %v2474 = vunpack.c.l.b16 %v2323
        %v2475 = vunpack.c.l.b16 %v2324
        %v2476 = vunpack.c.l.b16 %v2325
        %v2477 = vunpack.c.l.b16 %v2326
        %v2478 = vunpack.c.l.b16 %v2327
        %v2479 = vunpack.c.l.b16 %v2328
        %v2480 = vunpack.c.l.b16 %v2329
        %v2481 = vunpack.c.l.b16 %v2330
        %v2482 = vunpack.c.l.b16 %v2331
        %v2483 = vunpack.c.l.b16 %v2332
        %v2484 = vunpack.c.l.b16 %v2333
        %v2485 = vunpack.c.l.b16 %v2334
        %v2486 = vunpack.c.l.b16 %v2335
        %v2487 = vunpack.c.l.b16 %v2336
        %v2488 = vunpack.c.l.b16 %v2337
        %v2489 = vunpack.c.l.b16 %v2338
        %v2490 = vunpack.c.l.b16 %v2339
        %v2491 = vunpack.c.l.b16 %v2340
        %v2492 = vunpack.c.l.b16 %v2341
        %v2493 = vunpack.c.l.b16 %v2342
        %v2494 = vunpack.c.l.b16 %v2343
        %v2495 = vunpack.c.l.b16 %v2344
        %v2496 = vunpack.c.l.b16 %v2345
        %v2497 = vunpack.c.l.b16 %v2346
        %v2498 = vunpack.c.l.b16 %v2347
        %v2499 = vunpack.c.l.b16 %v2348
        %v2500 = vunpack.c.l.b16 %v2349
        %v2501 = vunpack.c.l.b16 %v2350
        %v2502 = vunpack.c.l.b16 %v2351
        %v2503 = vunpack.c.l.b16 %v2352
        %v2504 = vunpack.c.l.b16 %v2353
        %v2505 = vunpack.c.l.b16 %v2354
        %v2506 = vunpack.c.l.b16 %v2355
        %v2507 = vunpack.c.l.b16 %v2356
        %v2508 = vunpack.c.l.b16 %v2357
        %v2509 = vunpack.c.l.b16 %v2358
        %v2510 = vunpack.c.l.b16 %v2359
        %v2511 = vunpack.c.l.b16 %v2360
        %v2512 = vunpack.c.l.b16 %v2361
        %v2513 = vunpack.c.l.b16 %v2362
        %v2514 = vunpack.c.l.b16 %v2363
        %v2515 = vunpack.c.l.b16 %v2364
        %v2516 = vunpack.c.l.b16 %v2365
        %v2517 = vunpack.c.l.b16 %v2366
        %v2518 = vunpack.c.l.b16 %v2367
        %v2519 = vunpack.c.l.b16 %v2368
        %v2520 = vunpack.c.l.b16 %v2369
        %v2521 = vunpack.c.l.b16 %v2370
        %v2522 = vunpack.c.l.b16 %v2371
        %v2523 = vunpack.c.l.b16 %v2372
        %v2524 = vunpack.c.l.b16 %v2373
        %v2525 = vunpack.c.l.b16 %v2374
        %v2526 = vunpack.c.l.b16 %v2375
        %v2527 = vunpack.c.l.b16 %v2376
        %v2528 = vunpack.c.l.b16 %v2377
        %v2529 = vunpack.c.l.b16 %v2378
        %v2530 = vunpack.c.l.b16 %v2379
        %v2531 = vunpack.c.l.b16 %v2380
        %v2532 = vunpack.c.l.b16 %v2381
        %v2533 = vunpack.c.l.b16 %v2382
        %v2534 = vunpack.c.l.b16 %v2383
        %v2535 = vunpack.c.l.b16 %v2384
        %v2536 = vunpack.c.l.b16 %v2385
        %v2537 = vunpack.c.l.b16 %v2386
        %v2538 = vpack.c.b16 %v2467, %v2466
        %v2539 = vpack.c.b16 %v2469, %v2468
        %v2540 = vpack.c.b16 %v2471, %v2470
        %v2541 = vpack.c.b16 %v2473, %v2472
        %v2542 = vpack.c.b16 %v2475, %v2474
        %v2543 = vpack.c.b16 %v2477, %v2476
        %v2544 = vpack.c.b16 %v2479, %v2478
        %v2545 = vpack.c.b16 %v2481, %v2480
        %v2546 = vpack.c.b16 %v2483, %v2482
        %v2547 = vpack.c.b16 %v2485, %v2484
        %v2548 = vpack.c.b16 %v2487, %v2486
        %v2549 = vpack.c.b16 %v2489, %v2488
        %v2550 = vpack.c.b16 %v2491, %v2490
        %v2551 = vpack.c.b16 %v2493, %v2492
        %v2552 = vpack.c.b16 %v2495, %v2494
        %v2553 = vpack.c.b16 %v2497, %v2496
        %v2554 = vpack.c.b16 %v2499, %v2498
        %v2555 = vpack.c.b16 %v2501, %v2500
        %v2556 = vpack.c.b16 %v2503, %v2502
        %v2557 = vpack.c.b16 %v2505, %v2504
        %v2558 = vpack.c.b16 %v2507, %v2506
        %v2559 = vpack.c.b16 %v2509, %v2508
        %v2560 = vpack.c.b16 %v2511, %v2510
        %v2561 = vpack.c.b16 %v2513, %v2512
        %v2562 = vpack.c.b16 %v2515, %v2514
        %v2563 = vpack.c.b16 %v2517, %v2516
        %v2564 = vpack.c.b16 %v2519, %v2518
        %v2565 = vpack.c.b16 %v2521, %v2520
        %v2566 = vpack.c.b16 %v2523, %v2522
        %v2567 = vpack.c.b16 %v2525, %v2524
        %v2568 = vpack.c.b16 %v2527, %v2526
        %v2569 = vpack.c.b16 %v2529, %v2528
        %v2570 = vpack.c.b16 %v2531, %v2530
        %v2571 = vpack.c.b16 %v2533, %v2532
        %v2572 = vpack.c.b16 %v2535, %v2534
        %v2573 = vpack.c.b16 %v2537, %v2536
        %v2611 = vsel %vm1537, %v2286, 0
        %v2614 = vsel %vm1537, %v2285, 0
        %2616 = vmatprep.subr.bf16.mxu0 0
        %2617 = vmatpush1.bf16.msra.mxu0 %v2538
        %2618 = vmatprep.subr.bf16.mxu0 0
        %2619 = vmatpush1.bf16.msra.mxu0 %v2539
        %2620 = vmatprep.subr.bf16.mxu0 0
        %2621 = vmatpush1.bf16.msra.mxu0 %v2540
        %2622 = vmatprep.subr.bf16.mxu0 0
        %2623 = vmatpush1.bf16.msra.mxu0 %v2541
        %2624 = vmatprep.subr.bf16.mxu0 0
        %2625 = vmatpush1.bf16.msra.mxu0 %v2542
        %2626 = vmatprep.subr.bf16.mxu0 0
        %2627 = vmatpush1.bf16.msra.mxu0 %v2543
        %2628 = vmatprep.subr.bf16.mxu0 0
        %2629 = vmatpush1.bf16.msra.mxu0 %v2544
        %2630 = vmatprep.subr.bf16.mxu0 0
        %2631 = vmatpush1.bf16.msra.mxu0 %v2545
        %2632 = vmatprep.subr.bf16.mxu0 0
        %2633 = vmatpush1.bf16.msra.mxu0 %v2546
        %2634 = vmatprep.subr.bf16.mxu0 0
        %2635 = vmatpush1.bf16.msra.mxu0 %v2547
        %2636 = vmatprep.subr.bf16.mxu0 0
        %2637 = vmatpush1.bf16.msra.mxu0 %v2548
        %2638 = vmatprep.subr.bf16.mxu0 0
        %2639 = vmatpush1.bf16.msra.mxu0 %v2549
        %2640 = vmatprep.subr.bf16.mxu0 0
        %2641 = vmatpush1.bf16.msra.mxu0 %v2550
        %2642 = vmatprep.subr.bf16.mxu0 0
        %2643 = vmatpush1.bf16.msra.mxu0 %v2551
        %2644 = vmatprep.subr.bf16.mxu0 0
        %2645 = vmatpush1.bf16.msra.mxu0 %v2552
        %2646 = vmatprep.subr.bf16.mxu0 0
        %2647 = vmatpush1.bf16.msra.mxu0 %v2553
        %2648 = vmatprep.mubr.bf16.mxu0 %v2295
        %2649 = vmatmul.mubr.bf16.gmra.mrb[0].mxu0 %v2288
        %v2650 = vpop.f32.mrb[0].mxu0
        %v2651 = vadd.f32 %v2392, %v2650
        %v2652 = vpop.f32.mrb[0].mxu0
        %v2653 = vpop.f32.mrb[0].mxu0
        %v2654 = vadd.f32 %v2392, %v2653
        %v2655 = vpop.f32.mrb[0].mxu0
        %2656 = vmatprep.mubr.bf16.mxu0 %v2299
        %2657 = vmatmul.mubr.bf16.gmra.mrb[0].mxu0 %v2291
        %v2658 = vpop.f32.mrb[0].mxu0
        %v2659 = vadd.f32 %v2392, %v2658
        %v2660 = vpop.f32.mrb[0].mxu0
        %v2661 = vpop.f32.mrb[0].mxu0
        %v2662 = vadd.f32 %v2392, %v2661
        %v2663 = vpop.f32.mrb[0].mxu0
        %2664 = vdwg.mxu0
        %2665 = vmatprep.subr.bf16.mxu0 0
        %2666 = vmatpush1.bf16.msra.mxu0 %v2554
        %2667 = vmatprep.subr.bf16.mxu0 0
        %2668 = vmatpush1.bf16.msra.mxu0 %v2555
        %2669 = vmatprep.subr.bf16.mxu0 0
        %2670 = vmatpush1.bf16.msra.mxu0 %v2556
        %2671 = vmatprep.subr.bf16.mxu0 0
        %2672 = vmatpush1.bf16.msra.mxu0 %v2557
        %2673 = vmatprep.subr.bf16.mxu0 0
        %2674 = vmatpush1.bf16.msra.mxu0 %v2558
        %2675 = vmatprep.subr.bf16.mxu0 0
        %2676 = vmatpush1.bf16.msra.mxu0 %v2559
        %2677 = vmatprep.subr.bf16.mxu0 0
        %2678 = vmatpush1.bf16.msra.mxu0 %v2560
        %2679 = vmatprep.subr.bf16.mxu0 0
        %2680 = vmatpush1.bf16.msra.mxu0 %v2561
        %2681 = vmatprep.subr.bf16.mxu0 0
        %2682 = vmatpush1.bf16.msra.mxu0 %v2562
        %2683 = vmatprep.subr.bf16.mxu0 0
        %2684 = vmatpush1.bf16.msra.mxu0 %v2563
        %2685 = vmatprep.subr.bf16.mxu0 0
        %2686 = vmatpush1.bf16.msra.mxu0 %v2564
        %2687 = vmatprep.subr.bf16.mxu0 0
        %2688 = vmatpush1.bf16.msra.mxu0 %v2565
        %2689 = vmatprep.subr.bf16.mxu0 0
        %2690 = vmatpush1.bf16.msra.mxu0 %v2566
        %2691 = vmatprep.subr.bf16.mxu0 0
        %2692 = vmatpush1.bf16.msra.mxu0 %v2567
        %2693 = vmatprep.subr.bf16.mxu0 0
        %2694 = vmatpush1.bf16.msra.mxu0 %v2568
        %2695 = vmatprep.subr.bf16.mxu0 0
        %2696 = vmatpush1.bf16.msra.mxu0 %v2569
        %2697 = vmatprep.mubr.bf16.mxu0 %v2310
        %2698 = vmatmul.mubr.bf16.gmra.mrb[0].mxu0 %v2303
        %v2699 = vpop.f32.mrb[0].mxu0
        %v2700 = vadd.f32 %v2651, %v2699
        %v2701 = vpop.f32.mrb[0].mxu0
        %v2702 = vpop.f32.mrb[0].mxu0
        %v2703 = vadd.f32 %v2654, %v2702
        %v2704 = vpop.f32.mrb[0].mxu0
        %2705 = vmatprep.mubr.bf16.mxu0 %v2313
        %2706 = vmatmul.mubr.bf16.gmra.mrb[0].mxu0 %v2307
        %v2707 = vpop.f32.mrb[0].mxu0
        %v2708 = vadd.f32 %v2659, %v2707
        %v2709 = vpop.f32.mrb[0].mxu0
        %v2710 = vpop.f32.mrb[0].mxu0
        %v2711 = vadd.f32 %v2662, %v2710
        %v2712 = vpop.f32.mrb[0].mxu0
        %2713 = vdwg.mxu0
        %2714 = vmatprep.subr.bf16.mxu0 0
        %2715 = vmatpush1.bf16.msra.mxu0 %v2570
        %2716 = vmatprep.subr.bf16.mxu0 0
        %2717 = vmatpush1.bf16.msra.mxu0 %v2571
        %2718 = vmatprep.subr.bf16.mxu0 0
        %2719 = vmatpush1.bf16.msra.mxu0 %v2572
        %2720 = vmatprep.subr.bf16.mxu0 0
        %2721 = vmatpush1.bf16.msra.mxu0 %v2573
        %2722 = vmatprep.subr.bf16.mxu0 0
        %2723 = vmatpush1.bf16.msra.mxu0 0
        %2724 = vmatprep.subr.bf16.mxu0 0
        %2725 = vmatpush1.bf16.msra.mxu0 0
        %2726 = vmatprep.subr.bf16.mxu0 0
        %2727 = vmatpush1.bf16.msra.mxu0 0
        %2728 = vmatprep.subr.bf16.mxu0 0
        %2729 = vmatpush1.bf16.msra.mxu0 0
        %2730 = vmatprep.subr.bf16.mxu0 0
        %2731 = vmatpush1.bf16.msra.mxu0 0
        %2732 = vmatprep.subr.bf16.mxu0 0
        %2733 = vmatpush1.bf16.msra.mxu0 0
        %2734 = vmatprep.subr.bf16.mxu0 0
        %2735 = vmatpush1.bf16.msra.mxu0 0
        %2736 = vmatprep.subr.bf16.mxu0 0
        %2737 = vmatpush1.bf16.msra.mxu0 0
        %2738 = vmatprep.subr.bf16.mxu0 0
        %2739 = vmatpush1.bf16.msra.mxu0 0
        %2740 = vmatprep.subr.bf16.mxu0 0
        %2741 = vmatpush1.bf16.msra.mxu0 0
        %2742 = vmatprep.subr.bf16.mxu0 0
        %2743 = vmatpush1.bf16.msra.mxu0 0
        %2744 = vmatprep.subr.bf16.mxu0 0
        %2745 = vmatpush1.bf16.msra.mxu0 0
        %2746 = vmatprep.mubr.bf16.mxu0 0
        %2747 = vmatmul.mubr.bf16.gmra.mrb[0].mxu0 %v2611
        %v2748 = vpop.f32.mrb[0].mxu0
        %v2749 = vadd.f32 %v2700, %v2748
        %v2750 = vpop.f32.mrb[0].mxu0
        %v2751 = vpop.f32.mrb[0].mxu0
        %v2752 = vadd.f32 %v2703, %v2751
        %v2753 = vpop.f32.mrb[0].mxu0
        %2754 = vmatprep.mubr.bf16.mxu0 0
        %2755 = vmatmul.mubr.bf16.gmra.mrb[0].mxu0 %v2614
        %v2756 = vpop.f32.mrb[0].mxu0
        %v2757 = vadd.f32 %v2708, %v2756
        %v2758 = vpop.f32.mrb[0].mxu0
        %v2759 = vpop.f32.mrb[0].mxu0
        %v2760 = vadd.f32 %v2711, %v2759
        %v2761 = vpop.f32.mrb[0].mxu0
        %2762 = vdwg.mxu0
        %v2763 = vmax.f32 %v2749, 0.0
        %v2764 = vmax.f32 %v2752, 0.0
        %v2765 = vmax.f32 %v2757, 0.0
        %v2766 = vmax.f32 %v2760, 0.0
        %v2767 = vmax.f32 %v2763, %v2764
        %v2768 = vmax.f32 %v2764, %v2765
        %v2769 = vmax.f32 %v2765, %v2766
        %v2773 = vrot.slane %v2767, 1
        %v2774 = vrot.slane %v2768, 1
        %v2775 = vsel %vm909, %v2773, %v2774
        %v2776 = vrot.slane %v2769, 1
        %v2777 = vsel %vm909, %v2774, %v2776
        %v2781 = vmax.f32 %v2767, %v2775
        %v2782 = vmax.f32 %v2768, %v2777
        %v2783 = vmax.f32 %v2769, %v2776
        %v2784 = vpack.c.bf16 %v2782, %v2781
        %v2785 = vpack.c.bf16 %v2783, %v2783
        %v2786 = vld [vmem:[%s9] sm:$0x1]
        %vm2787 = vcmask 171008
        %v2789 = vsel %vm2787, %v2786, 0
        %vm2791 = vcmask 1041408
        %v2792 = vsel %vm2791, 4294967295, 65535
        %v2793 = vsel %vm2149, %v2792, 0
        %v2795 = vand.u32 %v2785, %v2793
        %2797 = vmatprep.subr.bf16.mxu0 0
        %2798 = vmatpush1.bf16.msra.mxu0 %v2784
        %2799 = vmatprep.subr.bf16.mxu0 0
        %2800 = vmatpush1.bf16.msra.mxu0 %v2795
        %2801 = vmatprep.subr.bf16.mxu0 0
        %2802 = vmatpush1.bf16.msra.mxu0 0
        %2803 = vmatprep.subr.bf16.mxu0 0
        %2804 = vmatpush1.bf16.msra.mxu0 0
        %2805 = vmatprep.subr.bf16.mxu0 0
        %2806 = vmatpush1.bf16.msra.mxu0 0
        %2807 = vmatprep.subr.bf16.mxu0 0
        %2808 = vmatpush1.bf16.msra.mxu0 0
        %2809 = vmatprep.subr.bf16.mxu0 0
        %2810 = vmatpush1.bf16.msra.mxu0 0
        %2811 = vmatprep.subr.bf16.mxu0 0
        %2812 = vmatpush1.bf16.msra.mxu0 0
        %2813 = vmatprep.subr.bf16.mxu0 0
        %2814 = vmatpush1.bf16.msra.mxu0 0
        %2815 = vmatprep.subr.bf16.mxu0 0
        %2816 = vmatpush1.bf16.msra.mxu0 0
        %2817 = vmatprep.subr.bf16.mxu0 0
        %2818 = vmatpush1.bf16.msra.mxu0 0
        %2819 = vmatprep.subr.bf16.mxu0 0
        %2820 = vmatpush1.bf16.msra.mxu0 0
        %2821 = vmatprep.subr.bf16.mxu0 0
        %2822 = vmatpush1.bf16.msra.mxu0 0
        %2823 = vmatprep.subr.bf16.mxu0 0
        %2824 = vmatpush1.bf16.msra.mxu0 0
        %2825 = vmatprep.subr.bf16.mxu0 0
        %2826 = vmatpush1.bf16.msra.mxu0 0
        %2827 = vmatprep.subr.bf16.mxu0 0
        %2828 = vmatpush1.bf16.msra.mxu0 0
        %2829 = vmatprep.mubr.bf16.mxu0 0
        %2830 = vmatmul.mubr.bf16.gmra.mrb[0].mxu0 %v2789
        %v2831 = vpop.f32.mrb[0].mxu0
        %v2832 = vadd.f32 0.0, %v2831
        %v2833 = vpop.f32.mrb[0].mxu0
        %v2834 = vpop.f32.mrb[0].mxu0
        %v2835 = vpop.f32.mrb[0].mxu0
        %2836 = vdwg.mxu0
        %v2837 = vpack.c.bf16 %v2832, %v2832
        %v2838 = vld [vmem:[%s10] sm:$0xf]
        %v2839 = vld [vmem:[%s10 + $0x4] sm:$0xf]
        %v2840 = vld [vmem:[%s10 + $0x8] sm:$0xf]
        %v2841 = vld [vmem:[%s10 + $0xc] sm:$0xf]
        %v2842 = vld [vmem:[%s10 + $0x10] sm:$0xf]
        %v2843 = vld [vmem:[%s10 + $0x14] sm:$0xf]
        %v2844 = vld [vmem:[%s10 + $0x18] sm:$0xf]
        %v2845 = vld [vmem:[%s10 + $0x1c] sm:$0xf]
        %v2846 = vld [vmem:[%s10 + $0x20] sm:$0xf]
        %v2847 = vld [vmem:[%s10 + $0x24] sm:$0xf]
        %v2848 = vld [vmem:[%s10 + $0x28] sm:$0xf]
        %v2849 = vld [vmem:[%s10 + $0x2c] sm:$0xf]
        %v2850 = vld [vmem:[%s10 + $0x30] sm:$0xf]
        %v2851 = vld [vmem:[%s10 + $0x34] sm:$0xf]
        %v2852 = vld [vmem:[%s10 + $0x38] sm:$0xf]
        %v2853 = vld [vmem:[%s10 + $0x3c] sm:$0xf]
        %v2854 = vld [vmem:[%s11] sm:$0x1]
        %v2871 = vunpack.c.l.b16 %v2838
        %v2872 = vunpack.c.l.b16 %v2839
        %v2873 = vunpack.c.l.b16 %v2840
        %v2874 = vunpack.c.l.b16 %v2841
        %v2875 = vunpack.c.l.b16 %v2842
        %v2876 = vunpack.c.l.b16 %v2843
        %v2877 = vunpack.c.l.b16 %v2844
        %v2878 = vunpack.c.l.b16 %v2845
        %v2879 = vunpack.c.l.b16 %v2846
        %v2880 = vunpack.c.l.b16 %v2847
        %v2881 = vunpack.c.l.b16 %v2848
        %v2882 = vunpack.c.l.b16 %v2849
        %v2883 = vunpack.c.l.b16 %v2850
        %v2884 = vunpack.c.l.b16 %v2851
        %v2885 = vunpack.c.l.b16 %v2852
        %v2886 = vunpack.c.l.b16 %v2853
        %v2887 = vpack.c.b16 %v2872, %v2871
        %v2888 = vpack.c.b16 %v2874, %v2873
        %v2889 = vpack.c.b16 %v2876, %v2875
        %v2890 = vpack.c.b16 %v2878, %v2877
        %v2891 = vpack.c.b16 %v2880, %v2879
        %v2892 = vpack.c.b16 %v2882, %v2881
        %v2893 = vpack.c.b16 %v2884, %v2883
        %v2894 = vpack.c.b16 %v2886, %v2885
        %2903 = vmatprep.subr.bf16.mxu0 0
        %2904 = vmatpush1.bf16.msra.mxu0 %v2887
        %2905 = vmatprep.subr.bf16.mxu0 0
        %2906 = vmatpush1.bf16.msra.mxu0 %v2888
        %2907 = vmatprep.subr.bf16.mxu0 0
        %2908 = vmatpush1.bf16.msra.mxu0 %v2889
        %2909 = vmatprep.subr.bf16.mxu0 0
        %2910 = vmatpush1.bf16.msra.mxu0 %v2890
        %2911 = vmatprep.subr.bf16.mxu0 0
        %2912 = vmatpush1.bf16.msra.mxu0 %v2891
        %2913 = vmatprep.subr.bf16.mxu0 0
        %2914 = vmatpush1.bf16.msra.mxu0 %v2892
        %2915 = vmatprep.subr.bf16.mxu0 0
        %2916 = vmatpush1.bf16.msra.mxu0 %v2893
        %2917 = vmatprep.subr.bf16.mxu0 0
        %2918 = vmatpush1.bf16.msra.mxu0 %v2894
        %2919 = vmatprep.subr.bf16.mxu0 0
        %2920 = vmatpush1.bf16.msra.mxu0 0
        %2921 = vmatprep.subr.bf16.mxu0 0
        %2922 = vmatpush1.bf16.msra.mxu0 0
        %2923 = vmatprep.subr.bf16.mxu0 0
        %2924 = vmatpush1.bf16.msra.mxu0 0
        %2925 = vmatprep.subr.bf16.mxu0 0
        %2926 = vmatpush1.bf16.msra.mxu0 0
        %2927 = vmatprep.subr.bf16.mxu0 0
        %2928 = vmatpush1.bf16.msra.mxu0 0
        %2929 = vmatprep.subr.bf16.mxu0 0
        %2930 = vmatpush1.bf16.msra.mxu0 0
        %2931 = vmatprep.subr.bf16.mxu0 0
        %2932 = vmatpush1.bf16.msra.mxu0 0
        %2933 = vmatprep.subr.bf16.mxu0 0
        %2934 = vmatpush1.bf16.msra.mxu0 0
        %2935 = vmatprep.mubr.bf16.mxu0 0
        %2936 = vmatmul.mubr.bf16.gmra.mrb[0].mxu0 %v2837
        %v2937 = vpop.f32.mrb[0].mxu0
        %v2938 = vadd.f32 %v2854, %v2937
        %v2939 = vpop.f32.mrb[0].mxu0
        %v2940 = vpop.f32.mrb[0].mxu0
        %v2941 = vpop.f32.mrb[0].mxu0
        %2942 = vdwg.mxu0
        %v2943 = vmax.f32 %v2938, 0.0
        %v2944 = vpack.c.bf16 %v2943, %v2943
        %v2945 = vld [vmem:[%s12] sm:$0xf]
        %v2946 = vld [vmem:[%s12 + $0x4] sm:$0xf]
        %v2947 = vld [vmem:[%s12 + $0x8] sm:$0xf]
        %v2948 = vld [vmem:[%s12 + $0xc] sm:$0xf]
        %v2949 = vld [vmem:[%s12 + $0x10] sm:$0xf]
        %v2950 = vld [vmem:[%s12 + $0x14] sm:$0xf]
        %v2951 = vld [vmem:[%s12 + $0x18] sm:$0xf]
        %v2952 = vld [vmem:[%s12 + $0x1c] sm:$0xf]
        %v2953 = vld [vmem:[%s13] sm:$0x1]
        %v2962 = vunpack.c.l.b16 %v2945
        %v2963 = vunpack.c.l.b16 %v2946
        %v2964 = vunpack.c.l.b16 %v2947
        %v2965 = vunpack.c.l.b16 %v2948
        %v2966 = vunpack.c.l.b16 %v2949
        %v2967 = vunpack.c.l.b16 %v2950
        %v2968 = vunpack.c.l.b16 %v2951
        %v2969 = vunpack.c.l.b16 %v2952
        %v2970 = vpack.c.b16 %v2963, %v2962
        %v2971 = vpack.c.b16 %v2965, %v2964
        %v2972 = vpack.c.b16 %v2967, %v2966
        %v2973 = vpack.c.b16 %v2969, %v2968
        %v2979 = vsel %vm1537, %v2944, 0
        %2981 = vmatprep.subr.bf16.mxu0 0
        %2982 = vmatpush1.bf16.msra.mxu0 %v2970
        %2983 = vmatprep.subr.bf16.mxu0 0
        %2984 = vmatpush1.bf16.msra.mxu0 %v2971
        %2985 = vmatprep.subr.bf16.mxu0 0
        %2986 = vmatpush1.bf16.msra.mxu0 %v2972
        %2987 = vmatprep.subr.bf16.mxu0 0
        %2988 = vmatpush1.bf16.msra.mxu0 %v2973
        %2989 = vmatprep.subr.bf16.mxu0 0
        %2990 = vmatpush1.bf16.msra.mxu0 0
        %2991 = vmatprep.subr.bf16.mxu0 0
        %2992 = vmatpush1.bf16.msra.mxu0 0
        %2993 = vmatprep.subr.bf16.mxu0 0
        %2994 = vmatpush1.bf16.msra.mxu0 0
        %2995 = vmatprep.subr.bf16.mxu0 0
        %2996 = vmatpush1.bf16.msra.mxu0 0
        %2997 = vmatprep.subr.bf16.mxu0 0
        %2998 = vmatpush1.bf16.msra.mxu0 0
        %2999 = vmatprep.subr.bf16.mxu0 0
        %3000 = vmatpush1.bf16.msra.mxu0 0
        %3001 = vmatprep.subr.bf16.mxu0 0
        %3002 = vmatpush1.bf16.msra.mxu0 0
        %3003 = vmatprep.subr.bf16.mxu0 0
        %3004 = vmatpush1.bf16.msra.mxu0 0
        %3005 = vmatprep.subr.bf16.mxu0 0
        %3006 = vmatpush1.bf16.msra.mxu0 0
        %3007 = vmatprep.subr.bf16.mxu0 0
        %3008 = vmatpush1.bf16.msra.mxu0 0
        %3009 = vmatprep.subr.bf16.mxu0 0
        %3010 = vmatpush1.bf16.msra.mxu0 0
        %3011 = vmatprep.subr.bf16.mxu0 0
        %3012 = vmatpush1.bf16.msra.mxu0 0
        %3013 = vmatprep.mubr.bf16.mxu0 0
        %3014 = vmatmul.mubr.bf16.gmra.mrb[0].mxu0 %v2979
        %v3015 = vpop.f32.mrb[0].mxu0
        %v3016 = vadd.f32 %v2953, %v3015
        %v3017 = vpop.f32.mrb[0].mxu0
        %v3018 = vpop.f32.mrb[0].mxu0
        %v3019 = vpop.f32.mrb[0].mxu0
        %3020 = vdwg.mxu0
        %3021 = vst [vmem:[%s459] sm:$0x1] %v3016
        %s3022 = sand.u32 %s335, 1
        %s3023 = scalar_lea.sflag [#allocation3], %s3022
        %s3024 = sand.u32 %s335, 1
        %s3025 = scalar_lea.vmem [#allocation2], %s3024
        // Predicated region
        $region77: #{simple_cnn_forward.1} parent=75 // pred_check
          %p3026 = pneg %p345
        $region78: #{simple_cnn_forward.1} parent=75 // pred_check_branch
          %3028 = sbr.rel (%p3026) target = $region80
        $region79: #{simple_cnn_forward.1} parent=75 // pred_region
          %s3030 = ssub.s32 16, 16
          %3031 = vsyncadd %s3023, %s3030
          %s3032 = smul.addr %s28, 16
          %s3033 = scalar_lea.hbm %s14, %s3032
          %s3035 = sshll.u32 %s3025, 4
          %s3036 = int_to_ptr.vmem [resolvable:$true] %s3035
          %3038 = dma.vmem_to_hbm [thread:$0]  %s3036, 16, %s3033, %s3023
        $region80: #{simple_cnn_forward.1} parent=75 // pred_fallthru
          _
      $region76: #{simple_cnn_forward.1} parent=5 // pred_fallthru
        _
      %p3039 = scmp.le.s32.totalorder 2, %s23
      // Predicated region
      $region81: #{simple_cnn_forward.1} parent=5 // pred_check
        %p3040 = pneg %p3039
      $region82: #{simple_cnn_forward.1} parent=5 // pred_check_branch
        %3042 = sbr.rel (%p3040) target = $region84
      $region83: #{simple_cnn_forward.1} parent=5 // pred_region
        %s3043 = ssub.s32 %s23, 2
        // Predicated region
        $region85: #{simple_cnn_forward.1} parent=83 // pred_check
          %p3044 = pneg %p351
        $region86: #{simple_cnn_forward.1} parent=83 // pred_check_branch
          %3046 = sbr.rel (%p3044) target = $region88
        $region87: #{simple_cnn_forward.1} parent=83 // pred_region
          %s3047 = sand.u32 %s336, 1
          %s3048 = scalar_lea.sflag [#allocation3], %s3047
          %s3049 = sand.u32 %s336, 1
          %s3050 = scalar_lea.vmem [#allocation2], %s3049
          %3051 = dma.done %s3048, 16
        $region88: #{simple_cnn_forward.1} parent=83 // pred_fallthru
          _
      $region84: #{simple_cnn_forward.1} parent=5 // pred_fallthru
        _
    $region6: #{simple_cnn_forward.1} parent=1 // loop_footer
      %s27 = sadd.s32 1, %s23
    $region7: #{simple_cnn_forward.1} parent=1 // loop_footer_branch
      %22 = sbr.rel target = $region3
    $region8: #{simple_cnn_forward.1} parent=1 // loop_exit
      _
    %3052 = vsyncpa [#allocation3], 1
    %s3053 = scalar_lea.sflag [#allocation3], 1
    %3054 = vsyncpa %s3053, 1

</llo_original>
